<compile_context>
chip_gen: v7x
topology: tpu7x:2x2x1
jax: 0.10.0
libtpu: 0.0.40
codegen_flags: <defaults>
</compile_context>

<pallas_src>
import jax
import jax.numpy as jnp
from jax import lax
from jax.experimental import pallas as pl
from jax.experimental.pallas import tpu as pltpu


def _gru_encoder_block_kernel(tok_ref,      # SMEM scalar prefetch: (T_pad,) int32 token ids
                              gi_tab_ref,   # (V, 3H)  f32  precomputed emb @ W_ih^T + b_ih (VMEM-resident)
                              h0_ref,       # (1, H)   f32  initial hidden
                              whh_ref,      # (H, 3H)  bf16 W_hh^T (VMEM-resident)
                              bhh_ref,      # (1, 3H)  f32  bias_hh
                              out_ref,      # (TB, H)  f32  per-step GRU outputs for this block
                              h_scratch):   # (1, H)   f32  recurrent carry across grid steps
    H = h0_ref.shape[1]
    TB = out_ref.shape[0]
    g = pl.program_id(0)

    # Initialize the recurrent carry on the first timestep block.
    @pl.when(g == 0)
    def _():
        h_scratch[...] = h0_ref[...]

    # Hoist VMEM-resident operands out of the unrolled timestep loop.
    whh = whh_ref[...]
    bhh = bhh_ref[...]

    def step(i, h):
        tok = tok_ref[g * TB + i]                                # SMEM scalar read
        gi = gi_tab_ref[pl.ds(tok, 1), :]                        # (1, 3H) f32 gathered from VMEM
        gh = jnp.dot(h.astype(jnp.bfloat16), whh,
                     preferred_element_type=jnp.float32) + bhh   # (1, 3H) f32 on the MXU
        # PyTorch GRU gate order [r, z, n]; elementwise math in f32 (v5e-safe).
        r = jax.nn.sigmoid(gi[:, 0:H] + gh[:, 0:H])
        z = jax.nn.sigmoid(gi[:, H:2 * H] + gh[:, H:2 * H])
        n = jnp.tanh(gi[:, 2 * H:3 * H] + r * gh[:, 2 * H:3 * H])
        h_new = (1.0 - z) * n + z * h                            # (1, H) f32
        out_ref[pl.ds(i, 1), :] = h_new                          # dense VMEM tile, DMA'd once/block
        return h_new

    h_final = lax.fori_loop(0, TB, step, h_scratch[...], unroll=True)
    h_scratch[...] = h_final                                     # carry to next grid step


def prepare_params(emb, w_ih, w_hh, b_ih, b_hh):
    """One-time parameter prep; the whole input projection is folded into gi_table."""
    V, H = emb.shape
    gi_table = (emb.astype(jnp.float32) @ w_ih.astype(jnp.float32).T
                + b_ih.astype(jnp.float32).reshape(1, 3 * H))    # (V, 3H) f32
    return {
        "gi_table": gi_table,
        "w_hh_t": w_hh.T.astype(jnp.bfloat16),                   # (H, 3H)
        "b_hh": b_hh.reshape(1, 3 * H).astype(jnp.float32),
    }


def encoder_rnn_sequence(tokens, hidden0, params, timestep_block=8):
    """Run the encoder over a whole token sequence in ONE pallas_call.

    tokens: (T,) int32, hidden0: (1, 1, H) f32.
    Returns (outputs, hidden) with shapes (T, 1, H) and (1, 1, H), matching T applications
    of the torch EncoderRNN.forward single-step semantics.
    """
    gi_table = params["gi_table"]
    w_hh_t = params["w_hh_t"]
    b_hh = params["b_hh"]
    V = gi_table.shape[0]
    H = w_hh_t.shape[0]
    T = int(tokens.shape[0])

    tb = max(1, min(int(timestep_block), T))
    num_blocks = -(-T // tb)
    T_pad = num_blocks * tb

    # Guard the in-kernel row gather (nn.Embedding would fail on OOB ids; here we clamp).
    toks = jnp.clip(tokens.astype(jnp.int32), 0, V - 1)
    if T_pad != T:
        toks = jnp.concatenate([toks, jnp.zeros((T_pad - T,), jnp.int32)])
    h0 = hidden0.reshape(1, H).astype(jnp.float32)

    cost = pl.CostEstimate(
        flops=2 * T_pad * H * 3 * H,                 # per-step h @ W_hh^T
        transcendentals=3 * T_pad * H,               # sigmoid x2 + tanh
        bytes_accessed=(H * 3 * H * 2)               # W_hh^T bf16
        + (V * 3 * H * 4)                            # gi_table f32
        + (T_pad * H * 4)                            # output writeback
        + (3 * H * 4) + (H * 4),                     # bias + h0
    )

    grid_spec = pltpu.PrefetchScalarGridSpec(
        num_scalar_prefetch=1,
        grid=(num_blocks,),
        in_specs=[
            pl.BlockSpec((V, 3 * H), lambda g, tok: (0, 0)),     # gi_table (VMEM-resident)
            pl.BlockSpec((1, H), lambda g, tok: (0, 0)),         # h0
            pl.BlockSpec((H, 3 * H), lambda g, tok: (0, 0)),     # W_hh^T (VMEM-resident)
            pl.BlockSpec((1, 3 * H), lambda g, tok: (0, 0)),     # b_hh
        ],
        out_specs=pl.BlockSpec((tb, H), lambda g, tok: (g, 0)),  # dense (TB, H) output tile
        scratch_shapes=[pltpu.VMEM((1, H), jnp.float32)],        # recurrent hidden carry
    )

    outputs = pl.pallas_call(
        _gru_encoder_block_kernel,
        grid_spec=grid_spec,
        out_shape=jax.ShapeDtypeStruct((T_pad, H), jnp.float32),
        compiler_params=pltpu.CompilerParams(
            dimension_semantics=("arbitrary",)),                 # serial recurrence
        cost_estimate=cost,
    )(toks, gi_table, h0, w_hh_t, b_hh)

    outputs = outputs[:T]
    hidden = outputs[T - 1].reshape(1, 1, H)                     # last step == new hidden
    return outputs.reshape(T, 1, H), hidden


def encoder_rnn_forward(token, hidden, params):
    """Single-step forward matching torch EncoderRNN.forward: (output, hidden), each (1, 1, H)."""
    outputs, hidden_new = encoder_rnn_sequence(
        jnp.asarray(token).reshape(1), hidden, params, timestep_block=1)
    H = outputs.shape[-1]
    return outputs.reshape(1, 1, H), hidden_new


def _reference_sequence(tokens, hidden0, emb, w_ih, w_hh, b_ih, b_hh):
    """Pure-JAX reference mirroring torch.nn.GRU steps (same bf16 rounding of W_hh / h as kernel)."""
    H = emb.shape[1]
    whhq = w_hh.astype(jnp.bfloat16).astype(jnp.float32)
    h = hidden0.reshape(1, H).astype(jnp.float32)
    outs = []
    for t in range(int(tokens.shape[0])):
        x = emb[tokens[t]].reshape(1, H)
        gi = x @ w_ih.T + b_ih
        gh = h.astype(jnp.bfloat16).astype(jnp.float32) @ whhq.T + b_hh
        r = jax.nn.sigmoid(gi[:, 0:H] + gh[:, 0:H])
        z = jax.nn.sigmoid(gi[:, H:2 * H] + gh[:, H:2 * H])
        n = jnp.tanh(gi[:, 2 * H:] + r * gh[:, 2 * H:])
        h = (1.0 - z) * n + z * h
        outs.append(h.reshape(1, 1, H))
    return jnp.concatenate(outs, axis=0), h.reshape(1, 1, H)


if __name__ == "__main__":
    VOCAB = 64
    HIDDEN = 256        # module default hidden_size; multiple of 128 keeps gate slices lane-aligned
    SEQ = 8

    key = jax.random.PRNGKey(0)
    k_emb, k_wih, k_whh, k_bih, k_bhh, k_tok = jax.random.split(key, 6)

    bound = 1.0 / jnp.sqrt(jnp.float32(HIDDEN))
    emb = jax.random.normal(k_emb, (VOCAB, HIDDEN), dtype=jnp.float32)
    w_ih = jax.random.uniform(k_wih, (3 * HIDDEN, HIDDEN), jnp.float32, -bound, bound)
    w_hh = jax.random.uniform(k_whh, (3 * HIDDEN, HIDDEN), jnp.float32, -bound, bound)
    b_ih = jax.random.uniform(k_bih, (3 * HIDDEN,), jnp.float32, -bound, bound)
    b_hh = jax.random.uniform(k_bhh, (3 * HIDDEN,), jnp.float32, -bound, bound)

    params = prepare_params(emb, w_ih, w_hh, b_ih, b_hh)

    tokens = jax.random.randint(k_tok, (SEQ,), 0, VOCAB, dtype=jnp.int32)
    hidden0 = jnp.zeros((1, 1, HIDDEN), dtype=jnp.float32)   # EncoderRNN.initHidden()

    # Full-sequence encoder: one pallas_call, all SEQ tokens processed in one grid step (TB=8).
    outs, hid = encoder_rnn_sequence(tokens, hidden0, params, timestep_block=8)
    outs, hid = jax.block_until_ready((outs, hid))

    ref_outs, ref_hid = _reference_sequence(tokens, hidden0, emb, w_ih, w_hh, b_ih, b_hh)
    assert outs.shape == (SEQ, 1, HIDDEN) and hid.shape == (1, 1, HIDDEN)
    assert float(jnp.max(jnp.abs(outs - ref_outs))) < 2e-3
    assert float(jnp.max(jnp.abs(hid - ref_hid))) < 2e-3

    # Single-step calling convention (exactly torch EncoderRNN.forward with seq len 1).
    out1, hid1 = encoder_rnn_forward(tokens[:1], hidden0, params)
    out1, hid1 = jax.block_until_ready((out1, hid1))
    assert out1.shape == (1, 1, HIDDEN) and hid1.shape == (1, 1, HIDDEN)
    assert float(jnp.max(jnp.abs(out1 - ref_outs[0:1]))) < 2e-3
    assert float(jnp.max(jnp.abs(hid1 - ref_outs[0:1]))) < 2e-3

    print("KERNEL_OK")
</pallas_src>

<mosaic_0001>
module attributes {stable_mosaic.version = 11 : i64} {
  func.func @_gru_encoder_block_kernel(%arg0: i32, %arg1: memref<8xi32, #tpu.memory_space<smem>>, %arg2: memref<64x768xf32, #tpu.memory_space<vmem>>, %arg3: memref<1x256xf32, #tpu.memory_space<vmem>>, %arg4: memref<256x768xbf16, #tpu.memory_space<vmem>>, %arg5: memref<1x768xf32, #tpu.memory_space<vmem>>, %arg6: memref<8x256xf32, #tpu.memory_space<vmem>>, %arg7: memref<1x256xf32, #tpu.memory_space<vmem>>) attributes {dimension_semantics = [#tpu.dimension_semantics<arbitrary>], iteration_bounds = array<i64: 1>, scalar_prefetch = 1 : i64, scratch_operands = 1 : i64, tpu.core_type = #tpu.core_type<tc>, window_params = [{pipeline_mode = #tpu.pipeline_mode<synchronous>, transform_indices = @transform_0, window_bounds = array<i64: 64, 768>}, {pipeline_mode = #tpu.pipeline_mode<synchronous>, transform_indices = @transform_1, window_bounds = array<i64: 1, 256>}, {pipeline_mode = #tpu.pipeline_mode<synchronous>, transform_indices = @transform_2, window_bounds = array<i64: 256, 768>}, {pipeline_mode = #tpu.pipeline_mode<synchronous>, transform_indices = @transform_3, window_bounds = array<i64: 1, 768>}, {transform_indices = @transform_4, window_bounds = array<i64: 8, 256>}]} {
    %c0_i32 = arith.constant 0 : i32
    %0 = arith.cmpi eq, %arg0, %c0_i32 : i32
    %1 = arith.extui %0 : i1 to i32
    %c0_i32_0 = arith.constant 0 : i32
    %2 = arith.cmpi ne, %1, %c0_i32_0 : i32
    scf.if %2 {
      %c0_64 = arith.constant 0 : index
      %c0_65 = arith.constant 0 : index
      %303 = vector.load %arg3[%c0_64, %c0_65] : memref<1x256xf32, #tpu.memory_space<vmem>>, vector<1x256xf32>
      %c0_66 = arith.constant 0 : index
      %c0_67 = arith.constant 0 : index
      %304 = vector.load %arg7[%c0_66, %c0_67] : memref<1x256xf32, #tpu.memory_space<vmem>>, vector<1x256xf32>
      tpu.vector_store %arg7[%c0_66, %c0_67], %303 {strides = array<i32>} : memref<1x256xf32, #tpu.memory_space<vmem>>, vector<1x256xf32>,
    } else {
    }
    %c0 = arith.constant 0 : index
    %c0_1 = arith.constant 0 : index
    %3 = vector.load %arg4[%c0, %c0_1] : memref<256x768xbf16, #tpu.memory_space<vmem>>, vector<256x768xbf16>
    %c0_2 = arith.constant 0 : index
    %c0_3 = arith.constant 0 : index
    %4 = vector.load %arg5[%c0_2, %c0_3] : memref<1x768xf32, #tpu.memory_space<vmem>>, vector<1x768xf32>
    %c0_4 = arith.constant 0 : index
    %c0_5 = arith.constant 0 : index
    %5 = vector.load %arg7[%c0_4, %c0_5] : memref<1x256xf32, #tpu.memory_space<vmem>>, vector<1x256xf32>
    %c0_i32_6 = arith.constant 0 : i32
    %c8_i32 = arith.constant 8 : i32
    %6 = arith.muli %arg0, %c8_i32 : i32
    %7 = arith.addi %6, %c0_i32_6 : i32
    %8 = arith.index_cast %7 : i32 to index
    %9 = memref.load %arg1[%8] : memref<8xi32, #tpu.memory_space<smem>>
    %10 = arith.index_cast %9 : i32 to index
    %c0_7 = arith.constant 0 : index
    %11 = vector.load %arg2[%10, %c0_7] : memref<64x768xf32, #tpu.memory_space<vmem>>, vector<1x768xf32>
    %12 = arith.truncf %5 : vector<1x256xf32> to vector<1x256xbf16>
    %cst = arith.constant dense<0.000000e+00> : vector<1x768xf32>
    %13 = tpu.matmul %12, %3, %cst {dimension_numbers = #tpu.dot_dimension_numbers<[1], [0], [0], [1], [0, 0, 1, 1], [], []>} : vector<1x256xbf16>, vector<256x768xbf16>, vector<1x768xf32> -> vector<1x768xf32>
    %14 = arith.addf %13, %4 : vector<1x768xf32>
    %15 = vector.extract_strided_slice %11 {offsets = [0, 0], sizes = [1, 256], strides = [1, 1]} : vector<1x768xf32> to vector<1x256xf32>
    %16 = vector.extract_strided_slice %14 {offsets = [0, 0], sizes = [1, 256], strides = [1, 1]} : vector<1x768xf32> to vector<1x256xf32>
    %17 = arith.addf %15, %16 : vector<1x256xf32>
    %18 = arith.negf %17 : vector<1x256xf32>
    %19 = math.exp %18 : vector<1x256xf32>
    %cst_8 = arith.constant 1.000000e+00 : f32
    %20 = vector.broadcast %cst_8 : f32 to vector<1x256xf32>
    %21 = arith.addf %20, %19 : vector<1x256xf32>
    %22 = arith.divf %20, %21 : vector<1x256xf32>
    %23 = vector.extract_strided_slice %11 {offsets = [0, 256], sizes = [1, 256], strides = [1, 1]} : vector<1x768xf32> to vector<1x256xf32>
    %24 = vector.extract_strided_slice %14 {offsets = [0, 256], sizes = [1, 256], strides = [1, 1]} : vector<1x768xf32> to vector<1x256xf32>
    %25 = arith.addf %23, %24 : vector<1x256xf32>
    %26 = arith.negf %25 : vector<1x256xf32>
    %27 = math.exp %26 : vector<1x256xf32>
    %cst_9 = arith.constant 1.000000e+00 : f32
    %28 = vector.broadcast %cst_9 : f32 to vector<1x256xf32>
    %29 = arith.addf %28, %27 : vector<1x256xf32>
    %30 = arith.divf %28, %29 : vector<1x256xf32>
    %31 = vector.extract_strided_slice %11 {offsets = [0, 512], sizes = [1, 256], strides = [1, 1]} : vector<1x768xf32> to vector<1x256xf32>
    %32 = vector.extract_strided_slice %14 {offsets = [0, 512], sizes = [1, 256], strides = [1, 1]} : vector<1x768xf32> to vector<1x256xf32>
    %33 = arith.mulf %22, %32 : vector<1x256xf32>
    %34 = arith.addf %31, %33 : vector<1x256xf32>
    %35 = math.tanh %34 : vector<1x256xf32>
    %cst_10 = arith.constant 1.000000e+00 : f32
    %36 = vector.broadcast %cst_10 : f32 to vector<1x256xf32>
    %37 = arith.subf %36, %30 : vector<1x256xf32>
    %38 = arith.mulf %37, %35 : vector<1x256xf32>
    %39 = arith.mulf %30, %5 : vector<1x256xf32>
    %40 = arith.addf %38, %39 : vector<1x256xf32>
    %41 = arith.index_cast %c0_i32_6 : i32 to index
    %c0_11 = arith.constant 0 : index
    %42 = vector.load %arg6[%41, %c0_11] : memref<8x256xf32, #tpu.memory_space<vmem>>, vector<1x256xf32>
    tpu.vector_store %arg6[%41, %c0_11], %40 {strides = array<i32>} : memref<8x256xf32, #tpu.memory_space<vmem>>, vector<1x256xf32>,
    %c1_i32 = arith.constant 1 : i32
    %c8_i32_12 = arith.constant 8 : i32
    %43 = arith.muli %arg0, %c8_i32_12 : i32
    %44 = arith.addi %43, %c1_i32 : i32
    %45 = arith.index_cast %44 : i32 to index
    %46 = memref.load %arg1[%45] : memref<8xi32, #tpu.memory_space<smem>>
    %47 = arith.index_cast %46 : i32 to index
    %c0_13 = arith.constant 0 : index
    %48 = vector.load %arg2[%47, %c0_13] : memref<64x768xf32, #tpu.memory_space<vmem>>, vector<1x768xf32>
    %49 = arith.truncf %40 : vector<1x256xf32> to vector<1x256xbf16>
    %cst_14 = arith.constant dense<0.000000e+00> : vector<1x768xf32>
    %50 = tpu.matmul %49, %3, %cst_14 {dimension_numbers = #tpu.dot_dimension_numbers<[1], [0], [0], [1], [0, 0, 1, 1], [], []>} : vector<1x256xbf16>, vector<256x768xbf16>, vector<1x768xf32> -> vector<1x768xf32>
    %51 = arith.addf %50, %4 : vector<1x768xf32>
    %52 = vector.extract_strided_slice %48 {offsets = [0, 0], sizes = [1, 256], strides = [1, 1]} : vector<1x768xf32> to vector<1x256xf32>
    %53 = vector.extract_strided_slice %51 {offsets = [0, 0], sizes = [1, 256], strides = [1, 1]} : vector<1x768xf32> to vector<1x256xf32>
    %54 = arith.addf %52, %53 : vector<1x256xf32>
    %55 = arith.negf %54 : vector<1x256xf32>
    %56 = math.exp %55 : vector<1x256xf32>
    %cst_15 = arith.constant 1.000000e+00 : f32
    %57 = vector.broadcast %cst_15 : f32 to vector<1x256xf32>
    %58 = arith.addf %57, %56 : vector<1x256xf32>
    %59 = arith.divf %57, %58 : vector<1x256xf32>
    %60 = vector.extract_strided_slice %48 {offsets = [0, 256], sizes = [1, 256], strides = [1, 1]} : vector<1x768xf32> to vector<1x256xf32>
    %61 = vector.extract_strided_slice %51 {offsets = [0, 256], sizes = [1, 256], strides = [1, 1]} : vector<1x768xf32> to vector<1x256xf32>
    %62 = arith.addf %60, %61 : vector<1x256xf32>
    %63 = arith.negf %62 : vector<1x256xf32>
    %64 = math.exp %63 : vector<1x256xf32>
    %cst_16 = arith.constant 1.000000e+00 : f32
    %65 = vector.broadcast %cst_16 : f32 to vector<1x256xf32>
    %66 = arith.addf %65, %64 : vector<1x256xf32>
    %67 = arith.divf %65, %66 : vector<1x256xf32>
    %68 = vector.extract_strided_slice %48 {offsets = [0, 512], sizes = [1, 256], strides = [1, 1]} : vector<1x768xf32> to vector<1x256xf32>
    %69 = vector.extract_strided_slice %51 {offsets = [0, 512], sizes = [1, 256], strides = [1, 1]} : vector<1x768xf32> to vector<1x256xf32>
    %70 = arith.mulf %59, %69 : vector<1x256xf32>
    %71 = arith.addf %68, %70 : vector<1x256xf32>
    %72 = math.tanh %71 : vector<1x256xf32>
    %cst_17 = arith.constant 1.000000e+00 : f32
    %73 = vector.broadcast %cst_17 : f32 to vector<1x256xf32>
    %74 = arith.subf %73, %67 : vector<1x256xf32>
    %75 = arith.mulf %74, %72 : vector<1x256xf32>
    %76 = arith.mulf %67, %40 : vector<1x256xf32>
    %77 = arith.addf %75, %76 : vector<1x256xf32>
    %78 = arith.index_cast %c1_i32 : i32 to index
    %c0_18 = arith.constant 0 : index
    %79 = vector.load %arg6[%78, %c0_18] : memref<8x256xf32, #tpu.memory_space<vmem>>, vector<1x256xf32>
    tpu.vector_store %arg6[%78, %c0_18], %77 {strides = array<i32>} : memref<8x256xf32, #tpu.memory_space<vmem>>, vector<1x256xf32>,
    %c2_i32 = arith.constant 2 : i32
    %c8_i32_19 = arith.constant 8 : i32
    %80 = arith.muli %arg0, %c8_i32_19 : i32
    %81 = arith.addi %80, %c2_i32 : i32
    %82 = arith.index_cast %81 : i32 to index
    %83 = memref.load %arg1[%82] : memref<8xi32, #tpu.memory_space<smem>>
    %84 = arith.index_cast %83 : i32 to index
    %c0_20 = arith.constant 0 : index
    %85 = vector.load %arg2[%84, %c0_20] : memref<64x768xf32, #tpu.memory_space<vmem>>, vector<1x768xf32>
    %86 = arith.truncf %77 : vector<1x256xf32> to vector<1x256xbf16>
    %cst_21 = arith.constant dense<0.000000e+00> : vector<1x768xf32>
    %87 = tpu.matmul %86, %3, %cst_21 {dimension_numbers = #tpu.dot_dimension_numbers<[1], [0], [0], [1], [0, 0, 1, 1], [], []>} : vector<1x256xbf16>, vector<256x768xbf16>, vector<1x768xf32> -> vector<1x768xf32>
    %88 = arith.addf %87, %4 : vector<1x768xf32>
    %89 = vector.extract_strided_slice %85 {offsets = [0, 0], sizes = [1, 256], strides = [1, 1]} : vector<1x768xf32> to vector<1x256xf32>
    %90 = vector.extract_strided_slice %88 {offsets = [0, 0], sizes = [1, 256], strides = [1, 1]} : vector<1x768xf32> to vector<1x256xf32>
    %91 = arith.addf %89, %90 : vector<1x256xf32>
    %92 = arith.negf %91 : vector<1x256xf32>
    %93 = math.exp %92 : vector<1x256xf32>
    %cst_22 = arith.constant 1.000000e+00 : f32
    %94 = vector.broadcast %cst_22 : f32 to vector<1x256xf32>
    %95 = arith.addf %94, %93 : vector<1x256xf32>
    %96 = arith.divf %94, %95 : vector<1x256xf32>
    %97 = vector.extract_strided_slice %85 {offsets = [0, 256], sizes = [1, 256], strides = [1, 1]} : vector<1x768xf32> to vector<1x256xf32>
    %98 = vector.extract_strided_slice %88 {offsets = [0, 256], sizes = [1, 256], strides = [1, 1]} : vector<1x768xf32> to vector<1x256xf32>
    %99 = arith.addf %97, %98 : vector<1x256xf32>
    %100 = arith.negf %99 : vector<1x256xf32>
    %101 = math.exp %100 : vector<1x256xf32>
    %cst_23 = arith.constant 1.000000e+00 : f32
    %102 = vector.broadcast %cst_23 : f32 to vector<1x256xf32>
    %103 = arith.addf %102, %101 : vector<1x256xf32>
    %104 = arith.divf %102, %103 : vector<1x256xf32>
    %105 = vector.extract_strided_slice %85 {offsets = [0, 512], sizes = [1, 256], strides = [1, 1]} : vector<1x768xf32> to vector<1x256xf32>
    %106 = vector.extract_strided_slice %88 {offsets = [0, 512], sizes = [1, 256], strides = [1, 1]} : vector<1x768xf32> to vector<1x256xf32>
    %107 = arith.mulf %96, %106 : vector<1x256xf32>
    %108 = arith.addf %105, %107 : vector<1x256xf32>
    %109 = math.tanh %108 : vector<1x256xf32>
    %cst_24 = arith.constant 1.000000e+00 : f32
    %110 = vector.broadcast %cst_24 : f32 to vector<1x256xf32>
    %111 = arith.subf %110, %104 : vector<1x256xf32>
    %112 = arith.mulf %111, %109 : vector<1x256xf32>
    %113 = arith.mulf %104, %77 : vector<1x256xf32>
    %114 = arith.addf %112, %113 : vector<1x256xf32>
    %115 = arith.index_cast %c2_i32 : i32 to index
    %c0_25 = arith.constant 0 : index
    %116 = vector.load %arg6[%115, %c0_25] : memref<8x256xf32, #tpu.memory_space<vmem>>, vector<1x256xf32>
    tpu.vector_store %arg6[%115, %c0_25], %114 {strides = array<i32>} : memref<8x256xf32, #tpu.memory_space<vmem>>, vector<1x256xf32>,
    %c3_i32 = arith.constant 3 : i32
    %c8_i32_26 = arith.constant 8 : i32
    %117 = arith.muli %arg0, %c8_i32_26 : i32
    %118 = arith.addi %117, %c3_i32 : i32
    %119 = arith.index_cast %118 : i32 to index
    %120 = memref.load %arg1[%119] : memref<8xi32, #tpu.memory_space<smem>>
    %121 = arith.index_cast %120 : i32 to index
    %c0_27 = arith.constant 0 : index
    %122 = vector.load %arg2[%121, %c0_27] : memref<64x768xf32, #tpu.memory_space<vmem>>, vector<1x768xf32>
    %123 = arith.truncf %114 : vector<1x256xf32> to vector<1x256xbf16>
    %cst_28 = arith.constant dense<0.000000e+00> : vector<1x768xf32>
    %124 = tpu.matmul %123, %3, %cst_28 {dimension_numbers = #tpu.dot_dimension_numbers<[1], [0], [0], [1], [0, 0, 1, 1], [], []>} : vector<1x256xbf16>, vector<256x768xbf16>, vector<1x768xf32> -> vector<1x768xf32>
    %125 = arith.addf %124, %4 : vector<1x768xf32>
    %126 = vector.extract_strided_slice %122 {offsets = [0, 0], sizes = [1, 256], strides = [1, 1]} : vector<1x768xf32> to vector<1x256xf32>
    %127 = vector.extract_strided_slice %125 {offsets = [0, 0], sizes = [1, 256], strides = [1, 1]} : vector<1x768xf32> to vector<1x256xf32>
    %128 = arith.addf %126, %127 : vector<1x256xf32>
    %129 = arith.negf %128 : vector<1x256xf32>
    %130 = math.exp %129 : vector<1x256xf32>
    %cst_29 = arith.constant 1.000000e+00 : f32
    %131 = vector.broadcast %cst_29 : f32 to vector<1x256xf32>
    %132 = arith.addf %131, %130 : vector<1x256xf32>
    %133 = arith.divf %131, %132 : vector<1x256xf32>
    %134 = vector.extract_strided_slice %122 {offsets = [0, 256], sizes = [1, 256], strides = [1, 1]} : vector<1x768xf32> to vector<1x256xf32>
    %135 = vector.extract_strided_slice %125 {offsets = [0, 256], sizes = [1, 256], strides = [1, 1]} : vector<1x768xf32> to vector<1x256xf32>
    %136 = arith.addf %134, %135 : vector<1x256xf32>
    %137 = arith.negf %136 : vector<1x256xf32>
    %138 = math.exp %137 : vector<1x256xf32>
    %cst_30 = arith.constant 1.000000e+00 : f32
    %139 = vector.broadcast %cst_30 : f32 to vector<1x256xf32>
    %140 = arith.addf %139, %138 : vector<1x256xf32>
    %141 = arith.divf %139, %140 : vector<1x256xf32>
    %142 = vector.extract_strided_slice %122 {offsets = [0, 512], sizes = [1, 256], strides = [1, 1]} : vector<1x768xf32> to vector<1x256xf32>
    %143 = vector.extract_strided_slice %125 {offsets = [0, 512], sizes = [1, 256], strides = [1, 1]} : vector<1x768xf32> to vector<1x256xf32>
    %144 = arith.mulf %133, %143 : vector<1x256xf32>
    %145 = arith.addf %142, %144 : vector<1x256xf32>
    %146 = math.tanh %145 : vector<1x256xf32>
    %cst_31 = arith.constant 1.000000e+00 : f32
    %147 = vector.broadcast %cst_31 : f32 to vector<1x256xf32>
    %148 = arith.subf %147, %141 : vector<1x256xf32>
    %149 = arith.mulf %148, %146 : vector<1x256xf32>
    %150 = arith.mulf %141, %114 : vector<1x256xf32>
    %151 = arith.addf %149, %150 : vector<1x256xf32>
    %152 = arith.index_cast %c3_i32 : i32 to index
    %c0_32 = arith.constant 0 : index
    %153 = vector.load %arg6[%152, %c0_32] : memref<8x256xf32, #tpu.memory_space<vmem>>, vector<1x256xf32>
    tpu.vector_store %arg6[%152, %c0_32], %151 {strides = array<i32>} : memref<8x256xf32, #tpu.memory_space<vmem>>, vector<1x256xf32>,
    %c4_i32 = arith.constant 4 : i32
    %c8_i32_33 = arith.constant 8 : i32
    %154 = arith.muli %arg0, %c8_i32_33 : i32
    %155 = arith.addi %154, %c4_i32 : i32
    %156 = arith.index_cast %155 : i32 to index
    %157 = memref.load %arg1[%156] : memref<8xi32, #tpu.memory_space<smem>>
    %158 = arith.index_cast %157 : i32 to index
    %c0_34 = arith.constant 0 : index
    %159 = vector.load %arg2[%158, %c0_34] : memref<64x768xf32, #tpu.memory_space<vmem>>, vector<1x768xf32>
    %160 = arith.truncf %151 : vector<1x256xf32> to vector<1x256xbf16>
    %cst_35 = arith.constant dense<0.000000e+00> : vector<1x768xf32>
    %161 = tpu.matmul %160, %3, %cst_35 {dimension_numbers = #tpu.dot_dimension_numbers<[1], [0], [0], [1], [0, 0, 1, 1], [], []>} : vector<1x256xbf16>, vector<256x768xbf16>, vector<1x768xf32> -> vector<1x768xf32>
    %162 = arith.addf %161, %4 : vector<1x768xf32>
    %163 = vector.extract_strided_slice %159 {offsets = [0, 0], sizes = [1, 256], strides = [1, 1]} : vector<1x768xf32> to vector<1x256xf32>
    %164 = vector.extract_strided_slice %162 {offsets = [0, 0], sizes = [1, 256], strides = [1, 1]} : vector<1x768xf32> to vector<1x256xf32>
    %165 = arith.addf %163, %164 : vector<1x256xf32>
    %166 = arith.negf %165 : vector<1x256xf32>
    %167 = math.exp %166 : vector<1x256xf32>
    %cst_36 = arith.constant 1.000000e+00 : f32
    %168 = vector.broadcast %cst_36 : f32 to vector<1x256xf32>
    %169 = arith.addf %168, %167 : vector<1x256xf32>
    %170 = arith.divf %168, %169 : vector<1x256xf32>
    %171 = vector.extract_strided_slice %159 {offsets = [0, 256], sizes = [1, 256], strides = [1, 1]} : vector<1x768xf32> to vector<1x256xf32>
    %172 = vector.extract_strided_slice %162 {offsets = [0, 256], sizes = [1, 256], strides = [1, 1]} : vector<1x768xf32> to vector<1x256xf32>
    %173 = arith.addf %171, %172 : vector<1x256xf32>
    %174 = arith.negf %173 : vector<1x256xf32>
    %175 = math.exp %174 : vector<1x256xf32>
    %cst_37 = arith.constant 1.000000e+00 : f32
    %176 = vector.broadcast %cst_37 : f32 to vector<1x256xf32>
    %177 = arith.addf %176, %175 : vector<1x256xf32>
    %178 = arith.divf %176, %177 : vector<1x256xf32>
    %179 = vector.extract_strided_slice %159 {offsets = [0, 512], sizes = [1, 256], strides = [1, 1]} : vector<1x768xf32> to vector<1x256xf32>
    %180 = vector.extract_strided_slice %162 {offsets = [0, 512], sizes = [1, 256], strides = [1, 1]} : vector<1x768xf32> to vector<1x256xf32>
    %181 = arith.mulf %170, %180 : vector<1x256xf32>
    %182 = arith.addf %179, %181 : vector<1x256xf32>
    %183 = math.tanh %182 : vector<1x256xf32>
    %cst_38 = arith.constant 1.000000e+00 : f32
    %184 = vector.broadcast %cst_38 : f32 to vector<1x256xf32>
    %185 = arith.subf %184, %178 : vector<1x256xf32>
    %186 = arith.mulf %185, %183 : vector<1x256xf32>
    %187 = arith.mulf %178, %151 : vector<1x256xf32>
    %188 = arith.addf %186, %187 : vector<1x256xf32>
    %189 = arith.index_cast %c4_i32 : i32 to index
    %c0_39 = arith.constant 0 : index
    %190 = vector.load %arg6[%189, %c0_39] : memref<8x256xf32, #tpu.memory_space<vmem>>, vector<1x256xf32>
    tpu.vector_store %arg6[%189, %c0_39], %188 {strides = array<i32>} : memref<8x256xf32, #tpu.memory_space<vmem>>, vector<1x256xf32>,
    %c5_i32 = arith.constant 5 : i32
    %c8_i32_40 = arith.constant 8 : i32
    %191 = arith.muli %arg0, %c8_i32_40 : i32
    %192 = arith.addi %191, %c5_i32 : i32
    %193 = arith.index_cast %192 : i32 to index
    %194 = memref.load %arg1[%193] : memref<8xi32, #tpu.memory_space<smem>>
    %195 = arith.index_cast %194 : i32 to index
    %c0_41 = arith.constant 0 : index
    %196 = vector.load %arg2[%195, %c0_41] : memref<64x768xf32, #tpu.memory_space<vmem>>, vector<1x768xf32>
    %197 = arith.truncf %188 : vector<1x256xf32> to vector<1x256xbf16>
    %cst_42 = arith.constant dense<0.000000e+00> : vector<1x768xf32>
    %198 = tpu.matmul %197, %3, %cst_42 {dimension_numbers = #tpu.dot_dimension_numbers<[1], [0], [0], [1], [0, 0, 1, 1], [], []>} : vector<1x256xbf16>, vector<256x768xbf16>, vector<1x768xf32> -> vector<1x768xf32>
    %199 = arith.addf %198, %4 : vector<1x768xf32>
    %200 = vector.extract_strided_slice %196 {offsets = [0, 0], sizes = [1, 256], strides = [1, 1]} : vector<1x768xf32> to vector<1x256xf32>
    %201 = vector.extract_strided_slice %199 {offsets = [0, 0], sizes = [1, 256], strides = [1, 1]} : vector<1x768xf32> to vector<1x256xf32>
    %202 = arith.addf %200, %201 : vector<1x256xf32>
    %203 = arith.negf %202 : vector<1x256xf32>
    %204 = math.exp %203 : vector<1x256xf32>
    %cst_43 = arith.constant 1.000000e+00 : f32
    %205 = vector.broadcast %cst_43 : f32 to vector<1x256xf32>
    %206 = arith.addf %205, %204 : vector<1x256xf32>
    %207 = arith.divf %205, %206 : vector<1x256xf32>
    %208 = vector.extract_strided_slice %196 {offsets = [0, 256], sizes = [1, 256], strides = [1, 1]} : vector<1x768xf32> to vector<1x256xf32>
    %209 = vector.extract_strided_slice %199 {offsets = [0, 256], sizes = [1, 256], strides = [1, 1]} : vector<1x768xf32> to vector<1x256xf32>
    %210 = arith.addf %208, %209 : vector<1x256xf32>
    %211 = arith.negf %210 : vector<1x256xf32>
    %212 = math.exp %211 : vector<1x256xf32>
    %cst_44 = arith.constant 1.000000e+00 : f32
    %213 = vector.broadcast %cst_44 : f32 to vector<1x256xf32>
    %214 = arith.addf %213, %212 : vector<1x256xf32>
    %215 = arith.divf %213, %214 : vector<1x256xf32>
    %216 = vector.extract_strided_slice %196 {offsets = [0, 512], sizes = [1, 256], strides = [1, 1]} : vector<1x768xf32> to vector<1x256xf32>
    %217 = vector.extract_strided_slice %199 {offsets = [0, 512], sizes = [1, 256], strides = [1, 1]} : vector<1x768xf32> to vector<1x256xf32>
    %218 = arith.mulf %207, %217 : vector<1x256xf32>
    %219 = arith.addf %216, %218 : vector<1x256xf32>
    %220 = math.tanh %219 : vector<1x256xf32>
    %cst_45 = arith.constant 1.000000e+00 : f32
    %221 = vector.broadcast %cst_45 : f32 to vector<1x256xf32>
    %222 = arith.subf %221, %215 : vector<1x256xf32>
    %223 = arith.mulf %222, %220 : vector<1x256xf32>
    %224 = arith.mulf %215, %188 : vector<1x256xf32>
    %225 = arith.addf %223, %224 : vector<1x256xf32>
    %226 = arith.index_cast %c5_i32 : i32 to index
    %c0_46 = arith.constant 0 : index
    %227 = vector.load %arg6[%226, %c0_46] : memref<8x256xf32, #tpu.memory_space<vmem>>, vector<1x256xf32>
    tpu.vector_store %arg6[%226, %c0_46], %225 {strides = array<i32>} : memref<8x256xf32, #tpu.memory_space<vmem>>, vector<1x256xf32>,
    %c6_i32 = arith.constant 6 : i32
    %c8_i32_47 = arith.constant 8 : i32
    %228 = arith.muli %arg0, %c8_i32_47 : i32
    %229 = arith.addi %228, %c6_i32 : i32
    %230 = arith.index_cast %229 : i32 to index
    %231 = memref.load %arg1[%230] : memref<8xi32, #tpu.memory_space<smem>>
    %232 = arith.index_cast %231 : i32 to index
    %c0_48 = arith.constant 0 : index
    %233 = vector.load %arg2[%232, %c0_48] : memref<64x768xf32, #tpu.memory_space<vmem>>, vector<1x768xf32>
    %234 = arith.truncf %225 : vector<1x256xf32> to vector<1x256xbf16>
    %cst_49 = arith.constant dense<0.000000e+00> : vector<1x768xf32>
    %235 = tpu.matmul %234, %3, %cst_49 {dimension_numbers = #tpu.dot_dimension_numbers<[1], [0], [0], [1], [0, 0, 1, 1], [], []>} : vector<1x256xbf16>, vector<256x768xbf16>, vector<1x768xf32> -> vector<1x768xf32>
    %236 = arith.addf %235, %4 : vector<1x768xf32>
    %237 = vector.extract_strided_slice %233 {offsets = [0, 0], sizes = [1, 256], strides = [1, 1]} : vector<1x768xf32> to vector<1x256xf32>
    %238 = vector.extract_strided_slice %236 {offsets = [0, 0], sizes = [1, 256], strides = [1, 1]} : vector<1x768xf32> to vector<1x256xf32>
    %239 = arith.addf %237, %238 : vector<1x256xf32>
    %240 = arith.negf %239 : vector<1x256xf32>
    %241 = math.exp %240 : vector<1x256xf32>
    %cst_50 = arith.constant 1.000000e+00 : f32
    %242 = vector.broadcast %cst_50 : f32 to vector<1x256xf32>
    %243 = arith.addf %242, %241 : vector<1x256xf32>
    %244 = arith.divf %242, %243 : vector<1x256xf32>
    %245 = vector.extract_strided_slice %233 {offsets = [0, 256], sizes = [1, 256], strides = [1, 1]} : vector<1x768xf32> to vector<1x256xf32>
    %246 = vector.extract_strided_slice %236 {offsets = [0, 256], sizes = [1, 256], strides = [1, 1]} : vector<1x768xf32> to vector<1x256xf32>
    %247 = arith.addf %245, %246 : vector<1x256xf32>
    %248 = arith.negf %247 : vector<1x256xf32>
    %249 = math.exp %248 : vector<1x256xf32>
    %cst_51 = arith.constant 1.000000e+00 : f32
    %250 = vector.broadcast %cst_51 : f32 to vector<1x256xf32>
    %251 = arith.addf %250, %249 : vector<1x256xf32>
    %252 = arith.divf %250, %251 : vector<1x256xf32>
    %253 = vector.extract_strided_slice %233 {offsets = [0, 512], sizes = [1, 256], strides = [1, 1]} : vector<1x768xf32> to vector<1x256xf32>
    %254 = vector.extract_strided_slice %236 {offsets = [0, 512], sizes = [1, 256], strides = [1, 1]} : vector<1x768xf32> to vector<1x256xf32>
    %255 = arith.mulf %244, %254 : vector<1x256xf32>
    %256 = arith.addf %253, %255 : vector<1x256xf32>
    %257 = math.tanh %256 : vector<1x256xf32>
    %cst_52 = arith.constant 1.000000e+00 : f32
    %258 = vector.broadcast %cst_52 : f32 to vector<1x256xf32>
    %259 = arith.subf %258, %252 : vector<1x256xf32>
    %260 = arith.mulf %259, %257 : vector<1x256xf32>
    %261 = arith.mulf %252, %225 : vector<1x256xf32>
    %262 = arith.addf %260, %261 : vector<1x256xf32>
    %263 = arith.index_cast %c6_i32 : i32 to index
    %c0_53 = arith.constant 0 : index
    %264 = vector.load %arg6[%263, %c0_53] : memref<8x256xf32, #tpu.memory_space<vmem>>, vector<1x256xf32>
    tpu.vector_store %arg6[%263, %c0_53], %262 {strides = array<i32>} : memref<8x256xf32, #tpu.memory_space<vmem>>, vector<1x256xf32>,
    %c7_i32 = arith.constant 7 : i32
    %c8_i32_54 = arith.constant 8 : i32
    %265 = arith.muli %arg0, %c8_i32_54 : i32
    %266 = arith.addi %265, %c7_i32 : i32
    %267 = arith.index_cast %266 : i32 to index
    %268 = memref.load %arg1[%267] : memref<8xi32, #tpu.memory_space<smem>>
    %269 = arith.index_cast %268 : i32 to index
    %c0_55 = arith.constant 0 : index
    %270 = vector.load %arg2[%269, %c0_55] : memref<64x768xf32, #tpu.memory_space<vmem>>, vector<1x768xf32>
    %271 = arith.truncf %262 : vector<1x256xf32> to vector<1x256xbf16>
    %cst_56 = arith.constant dense<0.000000e+00> : vector<1x768xf32>
    %272 = tpu.matmul %271, %3, %cst_56 {dimension_numbers = #tpu.dot_dimension_numbers<[1], [0], [0], [1], [0, 0, 1, 1], [], []>} : vector<1x256xbf16>, vector<256x768xbf16>, vector<1x768xf32> -> vector<1x768xf32>
    %273 = arith.addf %272, %4 : vector<1x768xf32>
    %274 = vector.extract_strided_slice %270 {offsets = [0, 0], sizes = [1, 256], strides = [1, 1]} : vector<1x768xf32> to vector<1x256xf32>
    %275 = vector.extract_strided_slice %273 {offsets = [0, 0], sizes = [1, 256], strides = [1, 1]} : vector<1x768xf32> to vector<1x256xf32>
    %276 = arith.addf %274, %275 : vector<1x256xf32>
    %277 = arith.negf %276 : vector<1x256xf32>
    %278 = math.exp %277 : vector<1x256xf32>
    %cst_57 = arith.constant 1.000000e+00 : f32
    %279 = vector.broadcast %cst_57 : f32 to vector<1x256xf32>
    %280 = arith.addf %279, %278 : vector<1x256xf32>
    %281 = arith.divf %279, %280 : vector<1x256xf32>
    %282 = vector.extract_strided_slice %270 {offsets = [0, 256], sizes = [1, 256], strides = [1, 1]} : vector<1x768xf32> to vector<1x256xf32>
    %283 = vector.extract_strided_slice %273 {offsets = [0, 256], sizes = [1, 256], strides = [1, 1]} : vector<1x768xf32> to vector<1x256xf32>
    %284 = arith.addf %282, %283 : vector<1x256xf32>
    %285 = arith.negf %284 : vector<1x256xf32>
    %286 = math.exp %285 : vector<1x256xf32>
    %cst_58 = arith.constant 1.000000e+00 : f32
    %287 = vector.broadcast %cst_58 : f32 to vector<1x256xf32>
    %288 = arith.addf %287, %286 : vector<1x256xf32>
    %289 = arith.divf %287, %288 : vector<1x256xf32>
    %290 = vector.extract_strided_slice %270 {offsets = [0, 512], sizes = [1, 256], strides = [1, 1]} : vector<1x768xf32> to vector<1x256xf32>
    %291 = vector.extract_strided_slice %273 {offsets = [0, 512], sizes = [1, 256], strides = [1, 1]} : vector<1x768xf32> to vector<1x256xf32>
    %292 = arith.mulf %281, %291 : vector<1x256xf32>
    %293 = arith.addf %290, %292 : vector<1x256xf32>
    %294 = math.tanh %293 : vector<1x256xf32>
    %cst_59 = arith.constant 1.000000e+00 : f32
    %295 = vector.broadcast %cst_59 : f32 to vector<1x256xf32>
    %296 = arith.subf %295, %289 : vector<1x256xf32>
    %297 = arith.mulf %296, %294 : vector<1x256xf32>
    %298 = arith.mulf %289, %262 : vector<1x256xf32>
    %299 = arith.addf %297, %298 : vector<1x256xf32>
    %300 = arith.index_cast %c7_i32 : i32 to index
    %c0_60 = arith.constant 0 : index
    %301 = vector.load %arg6[%300, %c0_60] : memref<8x256xf32, #tpu.memory_space<vmem>>, vector<1x256xf32>
    tpu.vector_store %arg6[%300, %c0_60], %299 {strides = array<i32>} : memref<8x256xf32, #tpu.memory_space<vmem>>, vector<1x256xf32>,
    %c8_i32_61 = arith.constant 8 : i32
    %c0_62 = arith.constant 0 : index
    %c0_63 = arith.constant 0 : index
    %302 = vector.load %arg7[%c0_62, %c0_63] : memref<1x256xf32, #tpu.memory_space<vmem>>, vector<1x256xf32>
    tpu.vector_store %arg7[%c0_62, %c0_63], %299 {strides = array<i32>} : memref<1x256xf32, #tpu.memory_space<vmem>>, vector<1x256xf32>,
    return
  }
  func.func @transform_0(%arg0: i32, %arg1: memref<8xi32, #tpu.memory_space<smem>>) -> (i32, i32) {
    %c0_i32 = arith.constant 0 : i32
    %c0_i32_0 = arith.constant 0 : i32
    %c0_i32_1 = arith.constant 0 : i32
    return %c0_i32, %c0_i32_0 : i32, i32
  }
  func.func @transform_1(%arg0: i32, %arg1: memref<8xi32, #tpu.memory_space<smem>>) -> (i32, i32) {
    %c0_i32 = arith.constant 0 : i32
    %c0_i32_0 = arith.constant 0 : i32
    %c0_i32_1 = arith.constant 0 : i32
    return %c0_i32, %c0_i32_0 : i32, i32
  }
  func.func @transform_2(%arg0: i32, %arg1: memref<8xi32, #tpu.memory_space<smem>>) -> (i32, i32) {
    %c0_i32 = arith.constant 0 : i32
    %c0_i32_0 = arith.constant 0 : i32
    %c0_i32_1 = arith.constant 0 : i32
    return %c0_i32, %c0_i32_0 : i32, i32
  }
  func.func @transform_3(%arg0: i32, %arg1: memref<8xi32, #tpu.memory_space<smem>>) -> (i32, i32) {
    %c0_i32 = arith.constant 0 : i32
    %c0_i32_0 = arith.constant 0 : i32
    %c0_i32_1 = arith.constant 0 : i32
    return %c0_i32, %c0_i32_0 : i32, i32
  }
  func.func @transform_4(%arg0: i32, %arg1: memref<8xi32, #tpu.memory_space<smem>>) -> (i32, i32) {
    %c0_i32 = arith.constant 0 : i32
    %c0_i32_0 = arith.constant 0 : i32
    return %arg0, %c0_i32 : i32, i32
  }
}

</mosaic_0001>

<llo_original>
// kernel: tpu_custom_call.1
$region0: #{tpu_custom_call.1}
  #allocation0 [shape = 'u32[]', space=smem, size = 0x4, offset = 0x4, fixed_abs, tag = 'smem constant byte address 0x4 - core index']
  #allocation1 [shape = 'u32[144,128]{1,0:T(1,128)}', space=vmem, size = 0x12000, scoped, tag = 'internal scratch']
  #allocation2 [shape = 'f32[1,256]{1,0:T(1,128)}', space=vmem, size = 0x400, scoped, tag = 'scratch operand']
  #allocation3 [shape = 's32[1]{0}', space=sflag, size = 0x4, scoped, tag = 'scoped memory for tpu_custom_call.1']
  #allocation4 [shape = 'u8[512]{0}', space=smem, size = 0x200, scoped, tag = 'prefetched SMEM operand 0']
  %s0 = inlined_call_operand.hbm [shape: s32[8], index: 0, kind: input, shape index: {}]
  %s1 = inlined_call_operand.hbm [shape: f32[64,768], index: 1, kind: input, shape index: {}]
  %s2 = inlined_call_operand.vmem [shape: f32[1,256], index: 2, kind: input, shape index: {}]
  %s3 = inlined_call_operand.hbm [shape: bf16[256,768], index: 3, kind: input, shape index: {}]
  %s4 = inlined_call_operand.vmem [shape: f32[1,768], index: 4, kind: input, shape index: {}]
  %s5 = inlined_call_operand.hbm [shape: f32[8,256], index: 5, kind: output, shape index: {}]
  %s6 = sld [smem:[#allocation0]]
  $region38: #{tpu_custom_call.1} parent=0
    _
  %s8 = ssub.s32 1, %s6
  %s9 = scalar_select 0, %s8, %s6
  %11 = dma.hbm_to_smem %s0, 16, [#allocation4], [#allocation3]
  %12 = dma.done [#allocation3], 16
  %13 = sfence
  $region1: #{tpu_custom_call.1} parent=0
    #allocation5 [shape = 'u8[196608]{0}', space=vmem, size = 0x30000, scoped, tag = 'input window, operand 1, single buffered']
    #allocation6 [shape = 's32[1]{0}', space=sflag, size = 0x4, scoped, tag = 'scoped memory for tpu_custom_call.1']
    #allocation7 [shape = 's32[1]{0}', space=sflag, size = 0x4, scoped, tag = 'scoped memory for tpu_custom_call.1']
    #allocation8 [shape = 'u8[393216]{0}', space=vmem, size = 0x60000, scoped, tag = 'input window, operand 3, single buffered']
    #allocation9 [shape = 's32[1]{0}', space=sflag, size = 0x4, scoped, tag = 'scoped memory for tpu_custom_call.1']
    #allocation10 [shape = 'u8[8192]{0}', space=vmem, size = 0x2000, scoped, tag = 'output window, operand 0, single buffered']
    %14 = vsyncpa [#allocation6], 0
    %15 = vsyncpa [#allocation9], 0
    %16 = vsyncpa [#allocation7], 0
    // Predicated region
    $region2: #{tpu_custom_call.1} parent=1 // pred_check
      _
    $region3: #{tpu_custom_call.1} parent=1 // pred_check_branch
      %18 = sbr.rel (0) target = $region5
    $region4: #{tpu_custom_call.1} parent=1 // pred_region
      %s20 = ssub.s32 6144, 6144
      %21 = vsyncadd [#allocation6], %s20
      %s22 = sshll.u32 [#allocation5], 4
      %s23 = int_to_ptr.vmem [resolvable:$true] %s22
      %28 = dma.hbm_to_vmem [thread:$0]  %s1, 6144, %s23, [#allocation6], 768, 768, 48
    $region5: #{tpu_custom_call.1} parent=1 // pred_fallthru
      _
    // Predicated region
    $region6: #{tpu_custom_call.1} parent=1 // pred_check
      _
    $region7: #{tpu_custom_call.1} parent=1 // pred_check_branch
      %30 = sbr.rel (0) target = $region9
    $region8: #{tpu_custom_call.1} parent=1 // pred_region
      _
    $region9: #{tpu_custom_call.1} parent=1 // pred_fallthru
      _
    // Predicated region
    $region10: #{tpu_custom_call.1} parent=1 // pred_check
      _
    $region11: #{tpu_custom_call.1} parent=1 // pred_check_branch
      %32 = sbr.rel (0) target = $region13
    $region12: #{tpu_custom_call.1} parent=1 // pred_region
      %s34 = ssub.s32 12288, 12288
      %35 = vsyncadd [#allocation9], %s34
      %s36 = sshll.u32 [#allocation8], 4
      %s37 = int_to_ptr.vmem [resolvable:$true] %s36
      %42 = dma.hbm_to_vmem [thread:$0]  %s3, 12288, %s37, [#allocation9], 384, 384, 24
    $region13: #{tpu_custom_call.1} parent=1 // pred_fallthru
      _
    // Predicated region
    $region14: #{tpu_custom_call.1} parent=1 // pred_check
      _
    $region15: #{tpu_custom_call.1} parent=1 // pred_check_branch
      %44 = sbr.rel (0) target = $region17
    $region16: #{tpu_custom_call.1} parent=1 // pred_region
      _
    $region17: #{tpu_custom_call.1} parent=1 // pred_fallthru
      _
    // Predicated region
    $region18: #{tpu_custom_call.1} parent=1 // pred_check
      _
    $region19: #{tpu_custom_call.1} parent=1 // pred_check_branch
      %46 = sbr.rel (0) target = $region21
    $region20: #{tpu_custom_call.1} parent=1 // pred_region
      %47 = dma.done [#allocation6], 6144
    $region21: #{tpu_custom_call.1} parent=1 // pred_fallthru
      _
    // Predicated region
    $region22: #{tpu_custom_call.1} parent=1 // pred_check
      _
    $region23: #{tpu_custom_call.1} parent=1 // pred_check_branch
      %49 = sbr.rel (0) target = $region25
    $region24: #{tpu_custom_call.1} parent=1 // pred_region
      %50 = dma.done [#allocation9], 12288
    $region25: #{tpu_custom_call.1} parent=1 // pred_fallthru
      _
    %p51 = scmp.eq.s32.totalorder 0, 0
    // Predicated region
    $region26: #{tpu_custom_call.1} parent=1 // pred_check
      %p52 = pneg %p51
    $region27: #{tpu_custom_call.1} parent=1 // pred_check_branch
      %54 = sbr.rel (%p52) target = $region29
    $region28: #{tpu_custom_call.1} parent=1 // pred_region
      %v55 = vld [vmem:[%s2] sm:$0x3]
      %v56 = vlaneseq
      %vm57 = vcmp.ge.s32.totalorder %v56, 0
      %vm58 = vcmp.lt.s32.totalorder %v56, 256
      %vm59 = vmand %vm57, %vm58
      %60 = vst.msk [vmem:[#allocation2] sm:$0x3] %vm59, %v55
    $region29: #{tpu_custom_call.1} parent=1 // pred_fallthru
      _
    %v61 = vld [vmem:[#allocation8] sm:$0xff]
    %v62 = vld [vmem:[#allocation8 + $0x8] sm:$0xff]
    %v63 = vld [vmem:[#allocation8 + $0x10] sm:$0xff]
    %v64 = vld [vmem:[#allocation8 + $0x18] sm:$0xff]
    %v65 = vld [vmem:[#allocation8 + $0x20] sm:$0xff]
    %v66 = vld [vmem:[#allocation8 + $0x28] sm:$0xff]
    %v67 = vld [vmem:[#allocation8 + $0x30] sm:$0xff]
    %v68 = vld [vmem:[#allocation8 + $0x38] sm:$0xff]
    %v69 = vld [vmem:[#allocation8 + $0x40] sm:$0xff]
    %v70 = vld [vmem:[#allocation8 + $0x48] sm:$0xff]
    %v71 = vld [vmem:[#allocation8 + $0x50] sm:$0xff]
    %v72 = vld [vmem:[#allocation8 + $0x58] sm:$0xff]
    %v73 = vld [vmem:[#allocation8 + $0x60] sm:$0xff]
    %v74 = vld [vmem:[#allocation8 + $0x68] sm:$0xff]
    %v75 = vld [vmem:[#allocation8 + $0x70] sm:$0xff]
    %v76 = vld [vmem:[#allocation8 + $0x78] sm:$0xff]
    %v77 = vld [vmem:[#allocation8 + $0x80] sm:$0xff]
    %v78 = vld [vmem:[#allocation8 + $0x88] sm:$0xff]
    %v79 = vld [vmem:[#allocation8 + $0x90] sm:$0xff]
    %v80 = vld [vmem:[#allocation8 + $0x98] sm:$0xff]
    %v81 = vld [vmem:[#allocation8 + $0xa0] sm:$0xff]
    %v82 = vld [vmem:[#allocation8 + $0xa8] sm:$0xff]
    %v83 = vld [vmem:[#allocation8 + $0xb0] sm:$0xff]
    %v84 = vld [vmem:[#allocation8 + $0xb8] sm:$0xff]
    %v85 = vld [vmem:[#allocation8 + $0xc0] sm:$0xff]
    %v86 = vld [vmem:[#allocation8 + $0xc8] sm:$0xff]
    %v87 = vld [vmem:[#allocation8 + $0xd0] sm:$0xff]
    %v88 = vld [vmem:[#allocation8 + $0xd8] sm:$0xff]
    %v89 = vld [vmem:[#allocation8 + $0xe0] sm:$0xff]
    %v90 = vld [vmem:[#allocation8 + $0xe8] sm:$0xff]
    %v91 = vld [vmem:[#allocation8 + $0xf0] sm:$0xff]
    %v92 = vld [vmem:[#allocation8 + $0xf8] sm:$0xff]
    %v93 = vld [vmem:[#allocation8 + $0x100] sm:$0xff]
    %v94 = vld [vmem:[#allocation8 + $0x108] sm:$0xff]
    %v95 = vld [vmem:[#allocation8 + $0x110] sm:$0xff]
    %v96 = vld [vmem:[#allocation8 + $0x118] sm:$0xff]
    %v97 = vld [vmem:[#allocation8 + $0x120] sm:$0xff]
    %v98 = vld [vmem:[#allocation8 + $0x128] sm:$0xff]
    %v99 = vld [vmem:[#allocation8 + $0x130] sm:$0xff]
    %v100 = vld [vmem:[#allocation8 + $0x138] sm:$0xff]
    %v101 = vld [vmem:[#allocation8 + $0x140] sm:$0xff]
    %v102 = vld [vmem:[#allocation8 + $0x148] sm:$0xff]
    %v103 = vld [vmem:[#allocation8 + $0x150] sm:$0xff]
    %v104 = vld [vmem:[#allocation8 + $0x158] sm:$0xff]
    %v105 = vld [vmem:[#allocation8 + $0x160] sm:$0xff]
    %v106 = vld [vmem:[#allocation8 + $0x168] sm:$0xff]
    %v107 = vld [vmem:[#allocation8 + $0x170] sm:$0xff]
    %v108 = vld [vmem:[#allocation8 + $0x178] sm:$0xff]
    %v109 = vld [vmem:[#allocation8 + $0x180] sm:$0xff]
    %v110 = vld [vmem:[#allocation8 + $0x188] sm:$0xff]
    %v111 = vld [vmem:[#allocation8 + $0x190] sm:$0xff]
    %v112 = vld [vmem:[#allocation8 + $0x198] sm:$0xff]
    %v113 = vld [vmem:[#allocation8 + $0x1a0] sm:$0xff]
    %v114 = vld [vmem:[#allocation8 + $0x1a8] sm:$0xff]
    %v115 = vld [vmem:[#allocation8 + $0x1b0] sm:$0xff]
    %v116 = vld [vmem:[#allocation8 + $0x1b8] sm:$0xff]
    %v117 = vld [vmem:[#allocation8 + $0x1c0] sm:$0xff]
    %v118 = vld [vmem:[#allocation8 + $0x1c8] sm:$0xff]
    %v119 = vld [vmem:[#allocation8 + $0x1d0] sm:$0xff]
    %v120 = vld [vmem:[#allocation8 + $0x1d8] sm:$0xff]
    %v121 = vld [vmem:[#allocation8 + $0x1e0] sm:$0xff]
    %v122 = vld [vmem:[#allocation8 + $0x1e8] sm:$0xff]
    %v123 = vld [vmem:[#allocation8 + $0x1f0] sm:$0xff]
    %v124 = vld [vmem:[#allocation8 + $0x1f8] sm:$0xff]
    %v125 = vld [vmem:[#allocation8 + $0x200] sm:$0xff]
    %v126 = vld [vmem:[#allocation8 + $0x208] sm:$0xff]
    %v127 = vld [vmem:[#allocation8 + $0x210] sm:$0xff]
    %v128 = vld [vmem:[#allocation8 + $0x218] sm:$0xff]
    %v129 = vld [vmem:[#allocation8 + $0x220] sm:$0xff]
    %v130 = vld [vmem:[#allocation8 + $0x228] sm:$0xff]
    %v131 = vld [vmem:[#allocation8 + $0x230] sm:$0xff]
    %v132 = vld [vmem:[#allocation8 + $0x238] sm:$0xff]
    %v133 = vld [vmem:[#allocation8 + $0x240] sm:$0xff]
    %v134 = vld [vmem:[#allocation8 + $0x248] sm:$0xff]
    %v135 = vld [vmem:[#allocation8 + $0x250] sm:$0xff]
    %v136 = vld [vmem:[#allocation8 + $0x258] sm:$0xff]
    %v137 = vld [vmem:[#allocation8 + $0x260] sm:$0xff]
    %v138 = vld [vmem:[#allocation8 + $0x268] sm:$0xff]
    %v139 = vld [vmem:[#allocation8 + $0x270] sm:$0xff]
    %v140 = vld [vmem:[#allocation8 + $0x278] sm:$0xff]
    %v141 = vld [vmem:[#allocation8 + $0x280] sm:$0xff]
    %v142 = vld [vmem:[#allocation8 + $0x288] sm:$0xff]
    %v143 = vld [vmem:[#allocation8 + $0x290] sm:$0xff]
    %v144 = vld [vmem:[#allocation8 + $0x298] sm:$0xff]
    %v145 = vld [vmem:[#allocation8 + $0x2a0] sm:$0xff]
    %v146 = vld [vmem:[#allocation8 + $0x2a8] sm:$0xff]
    %v147 = vld [vmem:[#allocation8 + $0x2b0] sm:$0xff]
    %v148 = vld [vmem:[#allocation8 + $0x2b8] sm:$0xff]
    %v149 = vld [vmem:[#allocation8 + $0x2c0] sm:$0xff]
    %v150 = vld [vmem:[#allocation8 + $0x2c8] sm:$0xff]
    %v151 = vld [vmem:[#allocation8 + $0x2d0] sm:$0xff]
    %v152 = vld [vmem:[#allocation8 + $0x2d8] sm:$0xff]
    %v153 = vld [vmem:[#allocation8 + $0x2e0] sm:$0xff]
    %v154 = vld [vmem:[#allocation8 + $0x2e8] sm:$0xff]
    %v155 = vld [vmem:[#allocation8 + $0x2f0] sm:$0xff]
    %v156 = vld [vmem:[#allocation8 + $0x2f8] sm:$0xff]
    %v157 = vld [vmem:[%s4] sm:$0x3f]
    %v158 = vld [vmem:[#allocation2] sm:$0x3]
    %s159 = smul.u32 0, 8
    %s160 = sld [smem:[#allocation4 + %s159]]
    %s161 = sshra.s32 %s160, 3
    %s162 = sand.u32 %s160, 7
    %s163 = sshra.s32 %s160, 3
    %s164 = sand.u32 %s160, 7
    %s165 = smul.u32 %s161, 6
    %s166 = smul.u32 %s165, 8
    %s167 = sadd.s32 %s166, %s164
    %s168 = scalar_lea.vmem [#allocation5], %s167
    %v169 = vld [vmem:[%s168] ss:$8 sm:$0xf]
    %v170 = vld [vmem:[%s168] ss:$8 sm:$0x30]
    %v171 = vor.u32 %v169, %v170
    %v173 = vlaneseq
    %v174 = vshrl.u32 %v173, 7
    %v175 = vsub.s32 0, %v174
    %v176 = vrot.slane %v158, %v175
    %v177 = vlaneseq
    %v178 = vshrl.u32 %v177, 7
    %v179 = vsub.s32 1, %v178
    %v180 = vrot.slane %v158, %v179
    %v183 = vpack.c.bf16 %v176, %v176
    %v184 = vpack.c.bf16 %v180, %v180
    %v281 = vunpack.c.l.b16 %v61
    %v282 = vunpack.c.h.b16 %v61
    %v283 = vunpack.c.l.b16 %v62
    %v284 = vunpack.c.h.b16 %v62
    %v285 = vunpack.c.l.b16 %v63
    %v286 = vunpack.c.h.b16 %v63
    %v287 = vunpack.c.l.b16 %v64
    %v288 = vunpack.c.h.b16 %v64
    %v289 = vunpack.c.l.b16 %v65
    %v290 = vunpack.c.h.b16 %v65
    %v291 = vunpack.c.l.b16 %v66
    %v292 = vunpack.c.h.b16 %v66
    %v293 = vunpack.c.l.b16 %v67
    %v294 = vunpack.c.h.b16 %v67
    %v295 = vunpack.c.l.b16 %v68
    %v296 = vunpack.c.h.b16 %v68
    %v297 = vunpack.c.l.b16 %v69
    %v298 = vunpack.c.h.b16 %v69
    %v299 = vunpack.c.l.b16 %v70
    %v300 = vunpack.c.h.b16 %v70
    %v301 = vunpack.c.l.b16 %v71
    %v302 = vunpack.c.h.b16 %v71
    %v303 = vunpack.c.l.b16 %v72
    %v304 = vunpack.c.h.b16 %v72
    %v305 = vunpack.c.l.b16 %v73
    %v306 = vunpack.c.h.b16 %v73
    %v307 = vunpack.c.l.b16 %v74
    %v308 = vunpack.c.h.b16 %v74
    %v309 = vunpack.c.l.b16 %v75
    %v310 = vunpack.c.h.b16 %v75
    %v311 = vunpack.c.l.b16 %v76
    %v312 = vunpack.c.h.b16 %v76
    %v313 = vunpack.c.l.b16 %v77
    %v314 = vunpack.c.h.b16 %v77
    %v315 = vunpack.c.l.b16 %v78
    %v316 = vunpack.c.h.b16 %v78
    %v317 = vunpack.c.l.b16 %v79
    %v318 = vunpack.c.h.b16 %v79
    %v319 = vunpack.c.l.b16 %v80
    %v320 = vunpack.c.h.b16 %v80
    %v321 = vunpack.c.l.b16 %v81
    %v322 = vunpack.c.h.b16 %v81
    %v323 = vunpack.c.l.b16 %v82
    %v324 = vunpack.c.h.b16 %v82
    %v325 = vunpack.c.l.b16 %v83
    %v326 = vunpack.c.h.b16 %v83
    %v327 = vunpack.c.l.b16 %v84
    %v328 = vunpack.c.h.b16 %v84
    %v329 = vunpack.c.l.b16 %v85
    %v330 = vunpack.c.h.b16 %v85
    %v331 = vunpack.c.l.b16 %v86
    %v332 = vunpack.c.h.b16 %v86
    %v333 = vunpack.c.l.b16 %v87
    %v334 = vunpack.c.h.b16 %v87
    %v335 = vunpack.c.l.b16 %v88
    %v336 = vunpack.c.h.b16 %v88
    %v337 = vunpack.c.l.b16 %v89
    %v338 = vunpack.c.h.b16 %v89
    %v339 = vunpack.c.l.b16 %v90
    %v340 = vunpack.c.h.b16 %v90
    %v341 = vunpack.c.l.b16 %v91
    %v342 = vunpack.c.h.b16 %v91
    %v343 = vunpack.c.l.b16 %v92
    %v344 = vunpack.c.h.b16 %v92
    %v345 = vunpack.c.l.b16 %v93
    %v346 = vunpack.c.h.b16 %v93
    %v347 = vunpack.c.l.b16 %v94
    %v348 = vunpack.c.h.b16 %v94
    %v349 = vunpack.c.l.b16 %v95
    %v350 = vunpack.c.h.b16 %v95
    %v351 = vunpack.c.l.b16 %v96
    %v352 = vunpack.c.h.b16 %v96
    %v353 = vunpack.c.l.b16 %v97
    %v354 = vunpack.c.h.b16 %v97
    %v355 = vunpack.c.l.b16 %v98
    %v356 = vunpack.c.h.b16 %v98
    %v357 = vunpack.c.l.b16 %v99
    %v358 = vunpack.c.h.b16 %v99
    %v359 = vunpack.c.l.b16 %v100
    %v360 = vunpack.c.h.b16 %v100
    %v361 = vunpack.c.l.b16 %v101
    %v362 = vunpack.c.h.b16 %v101
    %v363 = vunpack.c.l.b16 %v102
    %v364 = vunpack.c.h.b16 %v102
    %v365 = vunpack.c.l.b16 %v103
    %v366 = vunpack.c.h.b16 %v103
    %v367 = vunpack.c.l.b16 %v104
    %v368 = vunpack.c.h.b16 %v104
    %v369 = vunpack.c.l.b16 %v105
    %v370 = vunpack.c.h.b16 %v105
    %v371 = vunpack.c.l.b16 %v106
    %v372 = vunpack.c.h.b16 %v106
    %v373 = vunpack.c.l.b16 %v107
    %v374 = vunpack.c.h.b16 %v107
    %v375 = vunpack.c.l.b16 %v108
    %v376 = vunpack.c.h.b16 %v108
    %v377 = vunpack.c.l.b16 %v109
    %v378 = vunpack.c.h.b16 %v109
    %v379 = vunpack.c.l.b16 %v110
    %v380 = vunpack.c.h.b16 %v110
    %v381 = vunpack.c.l.b16 %v111
    %v382 = vunpack.c.h.b16 %v111
    %v383 = vunpack.c.l.b16 %v112
    %v384 = vunpack.c.h.b16 %v112
    %v385 = vunpack.c.l.b16 %v113
    %v386 = vunpack.c.h.b16 %v113
    %v387 = vunpack.c.l.b16 %v114
    %v388 = vunpack.c.h.b16 %v114
    %v389 = vunpack.c.l.b16 %v115
    %v390 = vunpack.c.h.b16 %v115
    %v391 = vunpack.c.l.b16 %v116
    %v392 = vunpack.c.h.b16 %v116
    %v393 = vunpack.c.l.b16 %v117
    %v394 = vunpack.c.h.b16 %v117
    %v395 = vunpack.c.l.b16 %v118
    %v396 = vunpack.c.h.b16 %v118
    %v397 = vunpack.c.l.b16 %v119
    %v398 = vunpack.c.h.b16 %v119
    %v399 = vunpack.c.l.b16 %v120
    %v400 = vunpack.c.h.b16 %v120
    %v401 = vunpack.c.l.b16 %v121
    %v402 = vunpack.c.h.b16 %v121
    %v403 = vunpack.c.l.b16 %v122
    %v404 = vunpack.c.h.b16 %v122
    %v405 = vunpack.c.l.b16 %v123
    %v406 = vunpack.c.h.b16 %v123
    %v407 = vunpack.c.l.b16 %v124
    %v408 = vunpack.c.h.b16 %v124
    %v409 = vunpack.c.l.b16 %v125
    %v410 = vunpack.c.h.b16 %v125
    %v411 = vunpack.c.l.b16 %v126
    %v412 = vunpack.c.h.b16 %v126
    %v413 = vunpack.c.l.b16 %v127
    %v414 = vunpack.c.h.b16 %v127
    %v415 = vunpack.c.l.b16 %v128
    %v416 = vunpack.c.h.b16 %v128
    %v417 = vunpack.c.l.b16 %v129
    %v418 = vunpack.c.h.b16 %v129
    %v419 = vunpack.c.l.b16 %v130
    %v420 = vunpack.c.h.b16 %v130
    %v421 = vunpack.c.l.b16 %v131
    %v422 = vunpack.c.h.b16 %v131
    %v423 = vunpack.c.l.b16 %v132
    %v424 = vunpack.c.h.b16 %v132
    %v425 = vunpack.c.l.b16 %v133
    %v426 = vunpack.c.h.b16 %v133
    %v427 = vunpack.c.l.b16 %v134
    %v428 = vunpack.c.h.b16 %v134
    %v429 = vunpack.c.l.b16 %v135
    %v430 = vunpack.c.h.b16 %v135
    %v431 = vunpack.c.l.b16 %v136
    %v432 = vunpack.c.h.b16 %v136
    %v433 = vunpack.c.l.b16 %v137
    %v434 = vunpack.c.h.b16 %v137
    %v435 = vunpack.c.l.b16 %v138
    %v436 = vunpack.c.h.b16 %v138
    %v437 = vunpack.c.l.b16 %v139
    %v438 = vunpack.c.h.b16 %v139
    %v439 = vunpack.c.l.b16 %v140
    %v440 = vunpack.c.h.b16 %v140
    %v441 = vunpack.c.l.b16 %v141
    %v442 = vunpack.c.h.b16 %v141
    %v443 = vunpack.c.l.b16 %v142
    %v444 = vunpack.c.h.b16 %v142
    %v445 = vunpack.c.l.b16 %v143
    %v446 = vunpack.c.h.b16 %v143
    %v447 = vunpack.c.l.b16 %v144
    %v448 = vunpack.c.h.b16 %v144
    %v449 = vunpack.c.l.b16 %v145
    %v450 = vunpack.c.h.b16 %v145
    %v451 = vunpack.c.l.b16 %v146
    %v452 = vunpack.c.h.b16 %v146
    %v453 = vunpack.c.l.b16 %v147
    %v454 = vunpack.c.h.b16 %v147
    %v455 = vunpack.c.l.b16 %v148
    %v456 = vunpack.c.h.b16 %v148
    %v457 = vunpack.c.l.b16 %v149
    %v458 = vunpack.c.h.b16 %v149
    %v459 = vunpack.c.l.b16 %v150
    %v460 = vunpack.c.h.b16 %v150
    %v461 = vunpack.c.l.b16 %v151
    %v462 = vunpack.c.h.b16 %v151
    %v463 = vunpack.c.l.b16 %v152
    %v464 = vunpack.c.h.b16 %v152
    %v465 = vunpack.c.l.b16 %v153
    %v466 = vunpack.c.h.b16 %v153
    %v467 = vunpack.c.l.b16 %v154
    %v468 = vunpack.c.h.b16 %v154
    %v469 = vunpack.c.l.b16 %v155
    %v470 = vunpack.c.h.b16 %v155
    %v471 = vunpack.c.l.b16 %v156
    %v472 = vunpack.c.h.b16 %v156
    %v473 = vpack.c.b16 %v287, %v281
    %v474 = vpack.c.b16 %v288, %v282
    %v475 = vpack.c.b16 %v289, %v283
    %v476 = vpack.c.b16 %v290, %v284
    %v477 = vpack.c.b16 %v291, %v285
    %v478 = vpack.c.b16 %v292, %v286
    %v479 = vpack.c.b16 %v299, %v293
    %v480 = vpack.c.b16 %v300, %v294
    %v481 = vpack.c.b16 %v301, %v295
    %v482 = vpack.c.b16 %v302, %v296
    %v483 = vpack.c.b16 %v303, %v297
    %v484 = vpack.c.b16 %v304, %v298
    %v485 = vpack.c.b16 %v311, %v305
    %v486 = vpack.c.b16 %v312, %v306
    %v487 = vpack.c.b16 %v313, %v307
    %v488 = vpack.c.b16 %v314, %v308
    %v489 = vpack.c.b16 %v315, %v309
    %v490 = vpack.c.b16 %v316, %v310
    %v491 = vpack.c.b16 %v323, %v317
    %v492 = vpack.c.b16 %v324, %v318
    %v493 = vpack.c.b16 %v325, %v319
    %v494 = vpack.c.b16 %v326, %v320
    %v495 = vpack.c.b16 %v327, %v321
    %v496 = vpack.c.b16 %v328, %v322
    %v497 = vpack.c.b16 %v335, %v329
    %v498 = vpack.c.b16 %v336, %v330
    %v499 = vpack.c.b16 %v337, %v331
    %v500 = vpack.c.b16 %v338, %v332
    %v501 = vpack.c.b16 %v339, %v333
    %v502 = vpack.c.b16 %v340, %v334
    %v503 = vpack.c.b16 %v347, %v341
    %v504 = vpack.c.b16 %v348, %v342
    %v505 = vpack.c.b16 %v349, %v343
    %v506 = vpack.c.b16 %v350, %v344
    %v507 = vpack.c.b16 %v351, %v345
    %v508 = vpack.c.b16 %v352, %v346
    %v509 = vpack.c.b16 %v359, %v353
    %v510 = vpack.c.b16 %v360, %v354
    %v511 = vpack.c.b16 %v361, %v355
    %v512 = vpack.c.b16 %v362, %v356
    %v513 = vpack.c.b16 %v363, %v357
    %v514 = vpack.c.b16 %v364, %v358
    %v515 = vpack.c.b16 %v371, %v365
    %v516 = vpack.c.b16 %v372, %v366
    %v517 = vpack.c.b16 %v373, %v367
    %v518 = vpack.c.b16 %v374, %v368
    %v519 = vpack.c.b16 %v375, %v369
    %v520 = vpack.c.b16 %v376, %v370
    %v521 = vpack.c.b16 %v383, %v377
    %v522 = vpack.c.b16 %v384, %v378
    %v523 = vpack.c.b16 %v385, %v379
    %v524 = vpack.c.b16 %v386, %v380
    %v525 = vpack.c.b16 %v387, %v381
    %v526 = vpack.c.b16 %v388, %v382
    %v527 = vpack.c.b16 %v395, %v389
    %v528 = vpack.c.b16 %v396, %v390
    %v529 = vpack.c.b16 %v397, %v391
    %v530 = vpack.c.b16 %v398, %v392
    %v531 = vpack.c.b16 %v399, %v393
    %v532 = vpack.c.b16 %v400, %v394
    %v533 = vpack.c.b16 %v407, %v401
    %v534 = vpack.c.b16 %v408, %v402
    %v535 = vpack.c.b16 %v409, %v403
    %v536 = vpack.c.b16 %v410, %v404
    %v537 = vpack.c.b16 %v411, %v405
    %v538 = vpack.c.b16 %v412, %v406
    %v539 = vpack.c.b16 %v419, %v413
    %v540 = vpack.c.b16 %v420, %v414
    %v541 = vpack.c.b16 %v421, %v415
    %v542 = vpack.c.b16 %v422, %v416
    %v543 = vpack.c.b16 %v423, %v417
    %v544 = vpack.c.b16 %v424, %v418
    %v545 = vpack.c.b16 %v431, %v425
    %v546 = vpack.c.b16 %v432, %v426
    %v547 = vpack.c.b16 %v433, %v427
    %v548 = vpack.c.b16 %v434, %v428
    %v549 = vpack.c.b16 %v435, %v429
    %v550 = vpack.c.b16 %v436, %v430
    %v551 = vpack.c.b16 %v443, %v437
    %v552 = vpack.c.b16 %v444, %v438
    %v553 = vpack.c.b16 %v445, %v439
    %v554 = vpack.c.b16 %v446, %v440
    %v555 = vpack.c.b16 %v447, %v441
    %v556 = vpack.c.b16 %v448, %v442
    %v557 = vpack.c.b16 %v455, %v449
    %v558 = vpack.c.b16 %v456, %v450
    %v559 = vpack.c.b16 %v457, %v451
    %v560 = vpack.c.b16 %v458, %v452
    %v561 = vpack.c.b16 %v459, %v453
    %v562 = vpack.c.b16 %v460, %v454
    %v563 = vpack.c.b16 %v467, %v461
    %v564 = vpack.c.b16 %v468, %v462
    %v565 = vpack.c.b16 %v469, %v463
    %v566 = vpack.c.b16 %v470, %v464
    %v567 = vpack.c.b16 %v471, %v465
    %v568 = vpack.c.b16 %v472, %v466
    %v666 = vlaneseq
    %v667 = vshrl.u32 %v666, 7
    %v668 = vsub.s32 0, %v667
    %v669 = vrot.slane %v157, %v668
    %v670 = vlaneseq
    %v671 = vshrl.u32 %v670, 7
    %v672 = vsub.s32 1, %v671
    %v673 = vrot.slane %v157, %v672
    %v674 = vlaneseq
    %v675 = vshrl.u32 %v674, 7
    %v676 = vsub.s32 2, %v675
    %v677 = vrot.slane %v157, %v676
    %v678 = vlaneseq
    %v679 = vshrl.u32 %v678, 7
    %v680 = vsub.s32 3, %v679
    %v681 = vrot.slane %v157, %v680
    %v682 = vlaneseq
    %v683 = vshrl.u32 %v682, 7
    %v684 = vsub.s32 4, %v683
    %v685 = vrot.slane %v157, %v684
    %v686 = vlaneseq
    %v687 = vshrl.u32 %v686, 7
    %v688 = vsub.s32 5, %v687
    %v689 = vrot.slane %v157, %v688
    %696 = vmatprep.subr.bf16.mxu0 %v474
    %697 = vmatpush1.bf16.msra.mxu0 %v473
    %698 = vmatprep.subr.bf16.mxu0 %v480
    %699 = vmatpush1.bf16.msra.mxu0 %v479
    %700 = vmatprep.subr.bf16.mxu0 %v486
    %701 = vmatpush1.bf16.msra.mxu0 %v485
    %702 = vmatprep.subr.bf16.mxu0 %v492
    %703 = vmatpush1.bf16.msra.mxu0 %v491
    %704 = vmatprep.subr.bf16.mxu0 %v498
    %705 = vmatpush1.bf16.msra.mxu0 %v497
    %706 = vmatprep.subr.bf16.mxu0 %v504
    %707 = vmatpush1.bf16.msra.mxu0 %v503
    %708 = vmatprep.subr.bf16.mxu0 %v510
    %709 = vmatpush1.bf16.msra.mxu0 %v509
    %710 = vmatprep.subr.bf16.mxu0 %v516
    %711 = vmatpush1.bf16.msra.mxu0 %v515
    %712 = vmatprep.subr.bf16.mxu0 %v522
    %713 = vmatpush1.bf16.msra.mxu0 %v521
    %714 = vmatprep.subr.bf16.mxu0 %v528
    %715 = vmatpush1.bf16.msra.mxu0 %v527
    %716 = vmatprep.subr.bf16.mxu0 %v534
    %717 = vmatpush1.bf16.msra.mxu0 %v533
    %718 = vmatprep.subr.bf16.mxu0 %v540
    %719 = vmatpush1.bf16.msra.mxu0 %v539
    %720 = vmatprep.subr.bf16.mxu0 %v546
    %721 = vmatpush1.bf16.msra.mxu0 %v545
    %722 = vmatprep.subr.bf16.mxu0 %v552
    %723 = vmatpush1.bf16.msra.mxu0 %v551
    %724 = vmatprep.subr.bf16.mxu0 %v558
    %725 = vmatpush1.bf16.msra.mxu0 %v557
    %726 = vmatprep.subr.bf16.mxu0 %v564
    %727 = vmatpush1.bf16.msra.mxu0 %v563
    %728 = vmatprep.mubr.bf16.mxu0 %v184
    %729 = vmatmul.mubr.bf16.gmra.mrb[0].mxu0 %v183
    %v730 = vpop.f32.mrb[0].mxu0
    %v731 = vadd.f32 %v669, %v730
    %v732 = vpop.f32.mrb[0].mxu0
    %v733 = vadd.f32 %v673, %v732
    %v734 = vpop.f32.mrb[0].mxu0
    %v735 = vpop.f32.mrb[0].mxu0
    %736 = vdwg.mxu0
    %737 = vmatprep.subr.bf16.mxu0 %v476
    %738 = vmatpush1.bf16.msra.mxu0 %v475
    %739 = vmatprep.subr.bf16.mxu0 %v482
    %740 = vmatpush1.bf16.msra.mxu0 %v481
    %741 = vmatprep.subr.bf16.mxu0 %v488
    %742 = vmatpush1.bf16.msra.mxu0 %v487
    %743 = vmatprep.subr.bf16.mxu0 %v494
    %744 = vmatpush1.bf16.msra.mxu0 %v493
    %745 = vmatprep.subr.bf16.mxu0 %v500
    %746 = vmatpush1.bf16.msra.mxu0 %v499
    %747 = vmatprep.subr.bf16.mxu0 %v506
    %748 = vmatpush1.bf16.msra.mxu0 %v505
    %749 = vmatprep.subr.bf16.mxu0 %v512
    %750 = vmatpush1.bf16.msra.mxu0 %v511
    %751 = vmatprep.subr.bf16.mxu0 %v518
    %752 = vmatpush1.bf16.msra.mxu0 %v517
    %753 = vmatprep.subr.bf16.mxu0 %v524
    %754 = vmatpush1.bf16.msra.mxu0 %v523
    %755 = vmatprep.subr.bf16.mxu0 %v530
    %756 = vmatpush1.bf16.msra.mxu0 %v529
    %757 = vmatprep.subr.bf16.mxu0 %v536
    %758 = vmatpush1.bf16.msra.mxu0 %v535
    %759 = vmatprep.subr.bf16.mxu0 %v542
    %760 = vmatpush1.bf16.msra.mxu0 %v541
    %761 = vmatprep.subr.bf16.mxu0 %v548
    %762 = vmatpush1.bf16.msra.mxu0 %v547
    %763 = vmatprep.subr.bf16.mxu0 %v554
    %764 = vmatpush1.bf16.msra.mxu0 %v553
    %765 = vmatprep.subr.bf16.mxu0 %v560
    %766 = vmatpush1.bf16.msra.mxu0 %v559
    %767 = vmatprep.subr.bf16.mxu0 %v566
    %768 = vmatpush1.bf16.msra.mxu0 %v565
    %769 = vmatprep.mubr.bf16.mxu0 %v184
    %770 = vmatmul.mubr.bf16.gmra.mrb[0].mxu0 %v183
    %v771 = vpop.f32.mrb[0].mxu0
    %v772 = vadd.f32 %v677, %v771
    %v773 = vpop.f32.mrb[0].mxu0
    %v774 = vadd.f32 %v681, %v773
    %v775 = vpop.f32.mrb[0].mxu0
    %v776 = vpop.f32.mrb[0].mxu0
    %777 = vdwg.mxu0
    %778 = vmatprep.subr.bf16.mxu0 %v478
    %779 = vmatpush1.bf16.msra.mxu0 %v477
    %780 = vmatprep.subr.bf16.mxu0 %v484
    %781 = vmatpush1.bf16.msra.mxu0 %v483
    %782 = vmatprep.subr.bf16.mxu0 %v490
    %783 = vmatpush1.bf16.msra.mxu0 %v489
    %784 = vmatprep.subr.bf16.mxu0 %v496
    %785 = vmatpush1.bf16.msra.mxu0 %v495
    %786 = vmatprep.subr.bf16.mxu0 %v502
    %787 = vmatpush1.bf16.msra.mxu0 %v501
    %788 = vmatprep.subr.bf16.mxu0 %v508
    %789 = vmatpush1.bf16.msra.mxu0 %v507
    %790 = vmatprep.subr.bf16.mxu0 %v514
    %791 = vmatpush1.bf16.msra.mxu0 %v513
    %792 = vmatprep.subr.bf16.mxu0 %v520
    %793 = vmatpush1.bf16.msra.mxu0 %v519
    %794 = vmatprep.subr.bf16.mxu0 %v526
    %795 = vmatpush1.bf16.msra.mxu0 %v525
    %796 = vmatprep.subr.bf16.mxu0 %v532
    %797 = vmatpush1.bf16.msra.mxu0 %v531
    %798 = vmatprep.subr.bf16.mxu0 %v538
    %799 = vmatpush1.bf16.msra.mxu0 %v537
    %800 = vmatprep.subr.bf16.mxu0 %v544
    %801 = vmatpush1.bf16.msra.mxu0 %v543
    %802 = vmatprep.subr.bf16.mxu0 %v550
    %803 = vmatpush1.bf16.msra.mxu0 %v549
    %804 = vmatprep.subr.bf16.mxu0 %v556
    %805 = vmatpush1.bf16.msra.mxu0 %v555
    %806 = vmatprep.subr.bf16.mxu0 %v562
    %807 = vmatpush1.bf16.msra.mxu0 %v561
    %808 = vmatprep.subr.bf16.mxu0 %v568
    %809 = vmatpush1.bf16.msra.mxu0 %v567
    %810 = vmatprep.mubr.bf16.mxu0 %v184
    %811 = vmatmul.mubr.bf16.gmra.mrb[0].mxu0 %v183
    %v812 = vpop.f32.mrb[0].mxu0
    %v813 = vadd.f32 %v685, %v812
    %v814 = vpop.f32.mrb[0].mxu0
    %v815 = vadd.f32 %v689, %v814
    %v816 = vpop.f32.mrb[0].mxu0
    %v817 = vpop.f32.mrb[0].mxu0
    %818 = vdwg.mxu0
    %v821 = vcombine.low %v731, %v733
    %v823 = vunpack.c.l.s4 1966171168
    %v824 = vunpack.c.0.s8 %v823
    %v825 = vlaneseq
    %v826 = vshrl.u32 %v825, 7
    %v827 = vsub.s32 %v824, %v826
    %v828 = vrot.slane %v821, %v827
    %v830 = vunpack.c.l.s4 1966171168
    %v831 = vunpack.c.0.s8 %v830
    %v832 = vlaneseq
    %v833 = vshrl.u32 %v832, 7
    %v834 = vsub.s32 %v831, %v833
    %v835 = vrot.slane %v828, %v834
    %v837 = vadd.f32 %v171, %v835
    %v838 = vxor.u32 %v837, 2147483648
    %v839 = vmul.f32 %v838, 1.442695
    %v840 = vpow.pop %v839
    %v841 = vadd.f32 %v840, 1.0
    %v842 = vrcp.pop %v841
    %v843 = vmul.f32 1.0, %v842
    %v845 = vrot.slane %v171, 2
    %v849 = vcombine.low %v772, %v774
    %v851 = vunpack.c.l.s4 1966171168
    %v852 = vunpack.c.0.s8 %v851
    %v853 = vlaneseq
    %v854 = vshrl.u32 %v853, 7
    %v855 = vsub.s32 %v852, %v854
    %v856 = vrot.slane %v849, %v855
    %v858 = vunpack.c.l.s4 1966171168
    %v859 = vunpack.c.0.s8 %v858
    %v860 = vlaneseq
    %v861 = vshrl.u32 %v860, 7
    %v862 = vsub.s32 %v859, %v861
    %v863 = vrot.slane %v856, %v862
    %v865 = vadd.f32 %v845, %v863
    %v866 = vxor.u32 %v865, 2147483648
    %v867 = vmul.f32 %v866, 1.442695
    %v868 = vpow.pop %v867
    %v869 = vadd.f32 %v868, 1.0
    %v870 = vrcp.pop %v869
    %v871 = vmul.f32 1.0, %v870
    %v874 = vcombine.low %v813, %v815
    %v876 = vunpack.c.l.s4 1966171168
    %v877 = vunpack.c.0.s8 %v876
    %v878 = vlaneseq
    %v879 = vshrl.u32 %v878, 7
    %v880 = vsub.s32 %v877, %v879
    %v881 = vrot.slane %v874, %v880
    %v883 = vunpack.c.l.s4 1966171168
    %v884 = vunpack.c.0.s8 %v883
    %v885 = vlaneseq
    %v886 = vshrl.u32 %v885, 7
    %v887 = vsub.s32 %v884, %v886
    %v888 = vrot.slane %v881, %v887
    %v890 = vmul.f32 %v843, %v888
    %v891 = vrot.slane %v171, 4
    %v893 = vadd.f32 %v891, %v890
    %v894 = vtanh.pop %v893
    %v895 = vsub.f32 1.0, %v871
    %v896 = vmul.f32 %v895, %v894
    %v897 = vmul.f32 %v871, %v158
    %v898 = vadd.f32 %v896, %v897
    %v899 = vlaneseq
    %vm900 = vcmp.ge.s32.totalorder %v899, 0
    %vm901 = vcmp.lt.s32.totalorder %v899, 256
    %vm902 = vmand %vm900, %vm901
    %903 = vst.msk [vmem:[#allocation10] ss:$8 sm:$0x3] %vm902, %v898
    %904 = vst.msk [vmem:[#allocation10] ss:$8 sm:$0x0] %vm902, %v898
    %s905 = sadd.s32 %s159, 1
    %s906 = sld [smem:[#allocation4 + %s905]]
    %s907 = sshra.s32 %s906, 3
    %s908 = sand.u32 %s906, 7
    %s909 = sshra.s32 %s906, 3
    %s910 = sand.u32 %s906, 7
    %s911 = smul.u32 %s907, 6
    %s912 = smul.u32 %s911, 8
    %s913 = sadd.s32 %s912, %s910
    %s914 = scalar_lea.vmem [#allocation5], %s913
    %v915 = vld [vmem:[%s914] ss:$8 sm:$0xf]
    %v916 = vld [vmem:[%s914] ss:$8 sm:$0x30]
    %v917 = vor.u32 %v915, %v916
    %v919 = vlaneseq
    %v920 = vshrl.u32 %v919, 7
    %v921 = vsub.s32 0, %v920
    %v922 = vrot.slane %v898, %v921
    %v923 = vlaneseq
    %v924 = vshrl.u32 %v923, 7
    %v925 = vsub.s32 1, %v924
    %v926 = vrot.slane %v898, %v925
    %v929 = vpack.c.bf16 %v922, %v922
    %v930 = vpack.c.bf16 %v926, %v926
    %931 = vmatprep.subr.bf16.mxu0 %v474
    %932 = vmatpush1.bf16.msra.mxu0 %v473
    %933 = vmatprep.subr.bf16.mxu0 %v480
    %934 = vmatpush1.bf16.msra.mxu0 %v479
    %935 = vmatprep.subr.bf16.mxu0 %v486
    %936 = vmatpush1.bf16.msra.mxu0 %v485
    %937 = vmatprep.subr.bf16.mxu0 %v492
    %938 = vmatpush1.bf16.msra.mxu0 %v491
    %939 = vmatprep.subr.bf16.mxu0 %v498
    %940 = vmatpush1.bf16.msra.mxu0 %v497
    %941 = vmatprep.subr.bf16.mxu0 %v504
    %942 = vmatpush1.bf16.msra.mxu0 %v503
    %943 = vmatprep.subr.bf16.mxu0 %v510
    %944 = vmatpush1.bf16.msra.mxu0 %v509
    %945 = vmatprep.subr.bf16.mxu0 %v516
    %946 = vmatpush1.bf16.msra.mxu0 %v515
    %947 = vmatprep.subr.bf16.mxu0 %v522
    %948 = vmatpush1.bf16.msra.mxu0 %v521
    %949 = vmatprep.subr.bf16.mxu0 %v528
    %950 = vmatpush1.bf16.msra.mxu0 %v527
    %951 = vmatprep.subr.bf16.mxu0 %v534
    %952 = vmatpush1.bf16.msra.mxu0 %v533
    %953 = vmatprep.subr.bf16.mxu0 %v540
    %954 = vmatpush1.bf16.msra.mxu0 %v539
    %955 = vmatprep.subr.bf16.mxu0 %v546
    %956 = vmatpush1.bf16.msra.mxu0 %v545
    %957 = vmatprep.subr.bf16.mxu0 %v552
    %958 = vmatpush1.bf16.msra.mxu0 %v551
    %959 = vmatprep.subr.bf16.mxu0 %v558
    %960 = vmatpush1.bf16.msra.mxu0 %v557
    %961 = vmatprep.subr.bf16.mxu0 %v564
    %962 = vmatpush1.bf16.msra.mxu0 %v563
    %963 = vmatprep.mubr.bf16.mxu0 %v930
    %964 = vmatmul.mubr.bf16.gmra.mrb[0].mxu0 %v929
    %v965 = vpop.f32.mrb[0].mxu0
    %v966 = vadd.f32 %v669, %v965
    %v967 = vpop.f32.mrb[0].mxu0
    %v968 = vadd.f32 %v673, %v967
    %v969 = vpop.f32.mrb[0].mxu0
    %v970 = vpop.f32.mrb[0].mxu0
    %971 = vdwg.mxu0
    %972 = vmatprep.subr.bf16.mxu0 %v476
    %973 = vmatpush1.bf16.msra.mxu0 %v475
    %974 = vmatprep.subr.bf16.mxu0 %v482
    %975 = vmatpush1.bf16.msra.mxu0 %v481
    %976 = vmatprep.subr.bf16.mxu0 %v488
    %977 = vmatpush1.bf16.msra.mxu0 %v487
    %978 = vmatprep.subr.bf16.mxu0 %v494
    %979 = vmatpush1.bf16.msra.mxu0 %v493
    %980 = vmatprep.subr.bf16.mxu0 %v500
    %981 = vmatpush1.bf16.msra.mxu0 %v499
    %982 = vmatprep.subr.bf16.mxu0 %v506
    %983 = vmatpush1.bf16.msra.mxu0 %v505
    %984 = vmatprep.subr.bf16.mxu0 %v512
    %985 = vmatpush1.bf16.msra.mxu0 %v511
    %986 = vmatprep.subr.bf16.mxu0 %v518
    %987 = vmatpush1.bf16.msra.mxu0 %v517
    %988 = vmatprep.subr.bf16.mxu0 %v524
    %989 = vmatpush1.bf16.msra.mxu0 %v523
    %990 = vmatprep.subr.bf16.mxu0 %v530
    %991 = vmatpush1.bf16.msra.mxu0 %v529
    %992 = vmatprep.subr.bf16.mxu0 %v536
    %993 = vmatpush1.bf16.msra.mxu0 %v535
    %994 = vmatprep.subr.bf16.mxu0 %v542
    %995 = vmatpush1.bf16.msra.mxu0 %v541
    %996 = vmatprep.subr.bf16.mxu0 %v548
    %997 = vmatpush1.bf16.msra.mxu0 %v547
    %998 = vmatprep.subr.bf16.mxu0 %v554
    %999 = vmatpush1.bf16.msra.mxu0 %v553
    %1000 = vmatprep.subr.bf16.mxu0 %v560
    %1001 = vmatpush1.bf16.msra.mxu0 %v559
    %1002 = vmatprep.subr.bf16.mxu0 %v566
    %1003 = vmatpush1.bf16.msra.mxu0 %v565
    %1004 = vmatprep.mubr.bf16.mxu0 %v930
    %1005 = vmatmul.mubr.bf16.gmra.mrb[0].mxu0 %v929
    %v1006 = vpop.f32.mrb[0].mxu0
    %v1007 = vadd.f32 %v677, %v1006
    %v1008 = vpop.f32.mrb[0].mxu0
    %v1009 = vadd.f32 %v681, %v1008
    %v1010 = vpop.f32.mrb[0].mxu0
    %v1011 = vpop.f32.mrb[0].mxu0
    %1012 = vdwg.mxu0
    %1013 = vmatprep.subr.bf16.mxu0 %v478
    %1014 = vmatpush1.bf16.msra.mxu0 %v477
    %1015 = vmatprep.subr.bf16.mxu0 %v484
    %1016 = vmatpush1.bf16.msra.mxu0 %v483
    %1017 = vmatprep.subr.bf16.mxu0 %v490
    %1018 = vmatpush1.bf16.msra.mxu0 %v489
    %1019 = vmatprep.subr.bf16.mxu0 %v496
    %1020 = vmatpush1.bf16.msra.mxu0 %v495
    %1021 = vmatprep.subr.bf16.mxu0 %v502
    %1022 = vmatpush1.bf16.msra.mxu0 %v501
    %1023 = vmatprep.subr.bf16.mxu0 %v508
    %1024 = vmatpush1.bf16.msra.mxu0 %v507
    %1025 = vmatprep.subr.bf16.mxu0 %v514
    %1026 = vmatpush1.bf16.msra.mxu0 %v513
    %1027 = vmatprep.subr.bf16.mxu0 %v520
    %1028 = vmatpush1.bf16.msra.mxu0 %v519
    %1029 = vmatprep.subr.bf16.mxu0 %v526
    %1030 = vmatpush1.bf16.msra.mxu0 %v525
    %1031 = vmatprep.subr.bf16.mxu0 %v532
    %1032 = vmatpush1.bf16.msra.mxu0 %v531
    %1033 = vmatprep.subr.bf16.mxu0 %v538
    %1034 = vmatpush1.bf16.msra.mxu0 %v537
    %1035 = vmatprep.subr.bf16.mxu0 %v544
    %1036 = vmatpush1.bf16.msra.mxu0 %v543
    %1037 = vmatprep.subr.bf16.mxu0 %v550
    %1038 = vmatpush1.bf16.msra.mxu0 %v549
    %1039 = vmatprep.subr.bf16.mxu0 %v556
    %1040 = vmatpush1.bf16.msra.mxu0 %v555
    %1041 = vmatprep.subr.bf16.mxu0 %v562
    %1042 = vmatpush1.bf16.msra.mxu0 %v561
    %1043 = vmatprep.subr.bf16.mxu0 %v568
    %1044 = vmatpush1.bf16.msra.mxu0 %v567
    %1045 = vmatprep.mubr.bf16.mxu0 %v930
    %1046 = vmatmul.mubr.bf16.gmra.mrb[0].mxu0 %v929
    %v1047 = vpop.f32.mrb[0].mxu0
    %v1048 = vadd.f32 %v685, %v1047
    %v1049 = vpop.f32.mrb[0].mxu0
    %v1050 = vadd.f32 %v689, %v1049
    %v1051 = vpop.f32.mrb[0].mxu0
    %v1052 = vpop.f32.mrb[0].mxu0
    %1053 = vdwg.mxu0
    %v1056 = vcombine.low %v966, %v968
    %v1058 = vunpack.c.l.s4 1966171168
    %v1059 = vunpack.c.0.s8 %v1058
    %v1060 = vlaneseq
    %v1061 = vshrl.u32 %v1060, 7
    %v1062 = vsub.s32 %v1059, %v1061
    %v1063 = vrot.slane %v1056, %v1062
    %v1065 = vunpack.c.l.s4 1966171168
    %v1066 = vunpack.c.0.s8 %v1065
    %v1067 = vlaneseq
    %v1068 = vshrl.u32 %v1067, 7
    %v1069 = vsub.s32 %v1066, %v1068
    %v1070 = vrot.slane %v1063, %v1069
    %v1072 = vadd.f32 %v917, %v1070
    %v1073 = vxor.u32 %v1072, 2147483648
    %v1074 = vmul.f32 %v1073, 1.442695
    %v1075 = vpow.pop %v1074
    %v1076 = vadd.f32 %v1075, 1.0
    %v1077 = vrcp.pop %v1076
    %v1078 = vmul.f32 1.0, %v1077
    %v1080 = vrot.slane %v917, 2
    %v1084 = vcombine.low %v1007, %v1009
    %v1086 = vunpack.c.l.s4 1966171168
    %v1087 = vunpack.c.0.s8 %v1086
    %v1088 = vlaneseq
    %v1089 = vshrl.u32 %v1088, 7
    %v1090 = vsub.s32 %v1087, %v1089
    %v1091 = vrot.slane %v1084, %v1090
    %v1093 = vunpack.c.l.s4 1966171168
    %v1094 = vunpack.c.0.s8 %v1093
    %v1095 = vlaneseq
    %v1096 = vshrl.u32 %v1095, 7
    %v1097 = vsub.s32 %v1094, %v1096
    %v1098 = vrot.slane %v1091, %v1097
    %v1100 = vadd.f32 %v1080, %v1098
    %v1101 = vxor.u32 %v1100, 2147483648
    %v1102 = vmul.f32 %v1101, 1.442695
    %v1103 = vpow.pop %v1102
    %v1104 = vadd.f32 %v1103, 1.0
    %v1105 = vrcp.pop %v1104
    %v1106 = vmul.f32 1.0, %v1105
    %v1109 = vcombine.low %v1048, %v1050
    %v1111 = vunpack.c.l.s4 1966171168
    %v1112 = vunpack.c.0.s8 %v1111
    %v1113 = vlaneseq
    %v1114 = vshrl.u32 %v1113, 7
    %v1115 = vsub.s32 %v1112, %v1114
    %v1116 = vrot.slane %v1109, %v1115
    %v1118 = vunpack.c.l.s4 1966171168
    %v1119 = vunpack.c.0.s8 %v1118
    %v1120 = vlaneseq
    %v1121 = vshrl.u32 %v1120, 7
    %v1122 = vsub.s32 %v1119, %v1121
    %v1123 = vrot.slane %v1116, %v1122
    %v1125 = vmul.f32 %v1078, %v1123
    %v1126 = vrot.slane %v917, 4
    %v1128 = vadd.f32 %v1126, %v1125
    %v1129 = vtanh.pop %v1128
    %v1130 = vsub.f32 1.0, %v1106
    %v1131 = vmul.f32 %v1130, %v1129
    %v1132 = vmul.f32 %v1106, %v898
    %v1133 = vadd.f32 %v1131, %v1132
    %s1134 = scalar_lea.vmem [#allocation10], 1
    %1135 = vst.msk [vmem:[%s1134] ss:$8 sm:$0x3] %vm902, %v1133
    %1136 = vst.msk [vmem:[%s1134] ss:$8 sm:$0x0] %vm902, %v1133
    %s1137 = sadd.s32 %s159, 2
    %s1138 = sld [smem:[#allocation4 + %s1137]]
    %s1139 = sshra.s32 %s1138, 3
    %s1140 = sand.u32 %s1138, 7
    %s1141 = sshra.s32 %s1138, 3
    %s1142 = sand.u32 %s1138, 7
    %s1143 = smul.u32 %s1139, 6
    %s1144 = smul.u32 %s1143, 8
    %s1145 = sadd.s32 %s1144, %s1142
    %s1146 = scalar_lea.vmem [#allocation5], %s1145
    %v1147 = vld [vmem:[%s1146] ss:$8 sm:$0xf]
    %v1148 = vld [vmem:[%s1146] ss:$8 sm:$0x30]
    %v1149 = vor.u32 %v1147, %v1148
    %v1151 = vlaneseq
    %v1152 = vshrl.u32 %v1151, 7
    %v1153 = vsub.s32 0, %v1152
    %v1154 = vrot.slane %v1133, %v1153
    %v1155 = vlaneseq
    %v1156 = vshrl.u32 %v1155, 7
    %v1157 = vsub.s32 1, %v1156
    %v1158 = vrot.slane %v1133, %v1157
    %v1161 = vpack.c.bf16 %v1154, %v1154
    %v1162 = vpack.c.bf16 %v1158, %v1158
    %1163 = vmatprep.subr.bf16.mxu0 %v474
    %1164 = vmatpush1.bf16.msra.mxu0 %v473
    %1165 = vmatprep.subr.bf16.mxu0 %v480
    %1166 = vmatpush1.bf16.msra.mxu0 %v479
    %1167 = vmatprep.subr.bf16.mxu0 %v486
    %1168 = vmatpush1.bf16.msra.mxu0 %v485
    %1169 = vmatprep.subr.bf16.mxu0 %v492
    %1170 = vmatpush1.bf16.msra.mxu0 %v491
    %1171 = vmatprep.subr.bf16.mxu0 %v498
    %1172 = vmatpush1.bf16.msra.mxu0 %v497
    %1173 = vmatprep.subr.bf16.mxu0 %v504
    %1174 = vmatpush1.bf16.msra.mxu0 %v503
    %1175 = vmatprep.subr.bf16.mxu0 %v510
    %1176 = vmatpush1.bf16.msra.mxu0 %v509
    %1177 = vmatprep.subr.bf16.mxu0 %v516
    %1178 = vmatpush1.bf16.msra.mxu0 %v515
    %1179 = vmatprep.subr.bf16.mxu0 %v522
    %1180 = vmatpush1.bf16.msra.mxu0 %v521
    %1181 = vmatprep.subr.bf16.mxu0 %v528
    %1182 = vmatpush1.bf16.msra.mxu0 %v527
    %1183 = vmatprep.subr.bf16.mxu0 %v534
    %1184 = vmatpush1.bf16.msra.mxu0 %v533
    %1185 = vmatprep.subr.bf16.mxu0 %v540
    %1186 = vmatpush1.bf16.msra.mxu0 %v539
    %1187 = vmatprep.subr.bf16.mxu0 %v546
    %1188 = vmatpush1.bf16.msra.mxu0 %v545
    %1189 = vmatprep.subr.bf16.mxu0 %v552
    %1190 = vmatpush1.bf16.msra.mxu0 %v551
    %1191 = vmatprep.subr.bf16.mxu0 %v558
    %1192 = vmatpush1.bf16.msra.mxu0 %v557
    %1193 = vmatprep.subr.bf16.mxu0 %v564
    %1194 = vmatpush1.bf16.msra.mxu0 %v563
    %1195 = vmatprep.mubr.bf16.mxu0 %v1162
    %1196 = vmatmul.mubr.bf16.gmra.mrb[0].mxu0 %v1161
    %v1197 = vpop.f32.mrb[0].mxu0
    %v1198 = vadd.f32 %v669, %v1197
    %v1199 = vpop.f32.mrb[0].mxu0
    %v1200 = vadd.f32 %v673, %v1199
    %v1201 = vpop.f32.mrb[0].mxu0
    %v1202 = vpop.f32.mrb[0].mxu0
    %1203 = vdwg.mxu0
    %1204 = vmatprep.subr.bf16.mxu0 %v476
    %1205 = vmatpush1.bf16.msra.mxu0 %v475
    %1206 = vmatprep.subr.bf16.mxu0 %v482
    %1207 = vmatpush1.bf16.msra.mxu0 %v481
    %1208 = vmatprep.subr.bf16.mxu0 %v488
    %1209 = vmatpush1.bf16.msra.mxu0 %v487
    %1210 = vmatprep.subr.bf16.mxu0 %v494
    %1211 = vmatpush1.bf16.msra.mxu0 %v493
    %1212 = vmatprep.subr.bf16.mxu0 %v500
    %1213 = vmatpush1.bf16.msra.mxu0 %v499
    %1214 = vmatprep.subr.bf16.mxu0 %v506
    %1215 = vmatpush1.bf16.msra.mxu0 %v505
    %1216 = vmatprep.subr.bf16.mxu0 %v512
    %1217 = vmatpush1.bf16.msra.mxu0 %v511
    %1218 = vmatprep.subr.bf16.mxu0 %v518
    %1219 = vmatpush1.bf16.msra.mxu0 %v517
    %1220 = vmatprep.subr.bf16.mxu0 %v524
    %1221 = vmatpush1.bf16.msra.mxu0 %v523
    %1222 = vmatprep.subr.bf16.mxu0 %v530
    %1223 = vmatpush1.bf16.msra.mxu0 %v529
    %1224 = vmatprep.subr.bf16.mxu0 %v536
    %1225 = vmatpush1.bf16.msra.mxu0 %v535
    %1226 = vmatprep.subr.bf16.mxu0 %v542
    %1227 = vmatpush1.bf16.msra.mxu0 %v541
    %1228 = vmatprep.subr.bf16.mxu0 %v548
    %1229 = vmatpush1.bf16.msra.mxu0 %v547
    %1230 = vmatprep.subr.bf16.mxu0 %v554
    %1231 = vmatpush1.bf16.msra.mxu0 %v553
    %1232 = vmatprep.subr.bf16.mxu0 %v560
    %1233 = vmatpush1.bf16.msra.mxu0 %v559
    %1234 = vmatprep.subr.bf16.mxu0 %v566
    %1235 = vmatpush1.bf16.msra.mxu0 %v565
    %1236 = vmatprep.mubr.bf16.mxu0 %v1162
    %1237 = vmatmul.mubr.bf16.gmra.mrb[0].mxu0 %v1161
    %v1238 = vpop.f32.mrb[0].mxu0
    %v1239 = vadd.f32 %v677, %v1238
    %v1240 = vpop.f32.mrb[0].mxu0
    %v1241 = vadd.f32 %v681, %v1240
    %v1242 = vpop.f32.mrb[0].mxu0
    %v1243 = vpop.f32.mrb[0].mxu0
    %1244 = vdwg.mxu0
    %1245 = vmatprep.subr.bf16.mxu0 %v478
    %1246 = vmatpush1.bf16.msra.mxu0 %v477
    %1247 = vmatprep.subr.bf16.mxu0 %v484
    %1248 = vmatpush1.bf16.msra.mxu0 %v483
    %1249 = vmatprep.subr.bf16.mxu0 %v490
    %1250 = vmatpush1.bf16.msra.mxu0 %v489
    %1251 = vmatprep.subr.bf16.mxu0 %v496
    %1252 = vmatpush1.bf16.msra.mxu0 %v495
    %1253 = vmatprep.subr.bf16.mxu0 %v502
    %1254 = vmatpush1.bf16.msra.mxu0 %v501
    %1255 = vmatprep.subr.bf16.mxu0 %v508
    %1256 = vmatpush1.bf16.msra.mxu0 %v507
    %1257 = vmatprep.subr.bf16.mxu0 %v514
    %1258 = vmatpush1.bf16.msra.mxu0 %v513
    %1259 = vmatprep.subr.bf16.mxu0 %v520
    %1260 = vmatpush1.bf16.msra.mxu0 %v519
    %1261 = vmatprep.subr.bf16.mxu0 %v526
    %1262 = vmatpush1.bf16.msra.mxu0 %v525
    %1263 = vmatprep.subr.bf16.mxu0 %v532
    %1264 = vmatpush1.bf16.msra.mxu0 %v531
    %1265 = vmatprep.subr.bf16.mxu0 %v538
    %1266 = vmatpush1.bf16.msra.mxu0 %v537
    %1267 = vmatprep.subr.bf16.mxu0 %v544
    %1268 = vmatpush1.bf16.msra.mxu0 %v543
    %1269 = vmatprep.subr.bf16.mxu0 %v550
    %1270 = vmatpush1.bf16.msra.mxu0 %v549
    %1271 = vmatprep.subr.bf16.mxu0 %v556
    %1272 = vmatpush1.bf16.msra.mxu0 %v555
    %1273 = vmatprep.subr.bf16.mxu0 %v562
    %1274 = vmatpush1.bf16.msra.mxu0 %v561
    %1275 = vmatprep.subr.bf16.mxu0 %v568
    %1276 = vmatpush1.bf16.msra.mxu0 %v567
    %1277 = vmatprep.mubr.bf16.mxu0 %v1162
    %1278 = vmatmul.mubr.bf16.gmra.mrb[0].mxu0 %v1161
    %v1279 = vpop.f32.mrb[0].mxu0
    %v1280 = vadd.f32 %v685, %v1279
    %v1281 = vpop.f32.mrb[0].mxu0
    %v1282 = vadd.f32 %v689, %v1281
    %v1283 = vpop.f32.mrb[0].mxu0
    %v1284 = vpop.f32.mrb[0].mxu0
    %1285 = vdwg.mxu0
    %v1288 = vcombine.low %v1198, %v1200
    %v1290 = vunpack.c.l.s4 1966171168
    %v1291 = vunpack.c.0.s8 %v1290
    %v1292 = vlaneseq
    %v1293 = vshrl.u32 %v1292, 7
    %v1294 = vsub.s32 %v1291, %v1293
    %v1295 = vrot.slane %v1288, %v1294
    %v1297 = vunpack.c.l.s4 1966171168
    %v1298 = vunpack.c.0.s8 %v1297
    %v1299 = vlaneseq
    %v1300 = vshrl.u32 %v1299, 7
    %v1301 = vsub.s32 %v1298, %v1300
    %v1302 = vrot.slane %v1295, %v1301
    %v1304 = vadd.f32 %v1149, %v1302
    %v1305 = vxor.u32 %v1304, 2147483648
    %v1306 = vmul.f32 %v1305, 1.442695
    %v1307 = vpow.pop %v1306
    %v1308 = vadd.f32 %v1307, 1.0
    %v1309 = vrcp.pop %v1308
    %v1310 = vmul.f32 1.0, %v1309
    %v1312 = vrot.slane %v1149, 2
    %v1316 = vcombine.low %v1239, %v1241
    %v1318 = vunpack.c.l.s4 1966171168
    %v1319 = vunpack.c.0.s8 %v1318
    %v1320 = vlaneseq
    %v1321 = vshrl.u32 %v1320, 7
    %v1322 = vsub.s32 %v1319, %v1321
    %v1323 = vrot.slane %v1316, %v1322
    %v1325 = vunpack.c.l.s4 1966171168
    %v1326 = vunpack.c.0.s8 %v1325
    %v1327 = vlaneseq
    %v1328 = vshrl.u32 %v1327, 7
    %v1329 = vsub.s32 %v1326, %v1328
    %v1330 = vrot.slane %v1323, %v1329
    %v1332 = vadd.f32 %v1312, %v1330
    %v1333 = vxor.u32 %v1332, 2147483648
    %v1334 = vmul.f32 %v1333, 1.442695
    %v1335 = vpow.pop %v1334
    %v1336 = vadd.f32 %v1335, 1.0
    %v1337 = vrcp.pop %v1336
    %v1338 = vmul.f32 1.0, %v1337
    %v1341 = vcombine.low %v1280, %v1282
    %v1343 = vunpack.c.l.s4 1966171168
    %v1344 = vunpack.c.0.s8 %v1343
    %v1345 = vlaneseq
    %v1346 = vshrl.u32 %v1345, 7
    %v1347 = vsub.s32 %v1344, %v1346
    %v1348 = vrot.slane %v1341, %v1347
    %v1350 = vunpack.c.l.s4 1966171168
    %v1351 = vunpack.c.0.s8 %v1350
    %v1352 = vlaneseq
    %v1353 = vshrl.u32 %v1352, 7
    %v1354 = vsub.s32 %v1351, %v1353
    %v1355 = vrot.slane %v1348, %v1354
    %v1357 = vmul.f32 %v1310, %v1355
    %v1358 = vrot.slane %v1149, 4
    %v1360 = vadd.f32 %v1358, %v1357
    %v1361 = vtanh.pop %v1360
    %v1362 = vsub.f32 1.0, %v1338
    %v1363 = vmul.f32 %v1362, %v1361
    %v1364 = vmul.f32 %v1338, %v1133
    %v1365 = vadd.f32 %v1363, %v1364
    %s1366 = scalar_lea.vmem [#allocation10], 2
    %1367 = vst.msk [vmem:[%s1366] ss:$8 sm:$0x3] %vm902, %v1365
    %1368 = vst.msk [vmem:[%s1366] ss:$8 sm:$0x0] %vm902, %v1365
    %s1369 = sadd.s32 %s159, 3
    %s1370 = sld [smem:[#allocation4 + %s1369]]
    %s1371 = sshra.s32 %s1370, 3
    %s1372 = sand.u32 %s1370, 7
    %s1373 = sshra.s32 %s1370, 3
    %s1374 = sand.u32 %s1370, 7
    %s1375 = smul.u32 %s1371, 6
    %s1376 = smul.u32 %s1375, 8
    %s1377 = sadd.s32 %s1376, %s1374
    %s1378 = scalar_lea.vmem [#allocation5], %s1377
    %v1379 = vld [vmem:[%s1378] ss:$8 sm:$0xf]
    %v1380 = vld [vmem:[%s1378] ss:$8 sm:$0x30]
    %v1381 = vor.u32 %v1379, %v1380
    %v1383 = vlaneseq
    %v1384 = vshrl.u32 %v1383, 7
    %v1385 = vsub.s32 0, %v1384
    %v1386 = vrot.slane %v1365, %v1385
    %v1387 = vlaneseq
    %v1388 = vshrl.u32 %v1387, 7
    %v1389 = vsub.s32 1, %v1388
    %v1390 = vrot.slane %v1365, %v1389
    %v1393 = vpack.c.bf16 %v1386, %v1386
    %v1394 = vpack.c.bf16 %v1390, %v1390
    %1395 = vmatprep.subr.bf16.mxu0 %v474
    %1396 = vmatpush1.bf16.msra.mxu0 %v473
    %1397 = vmatprep.subr.bf16.mxu0 %v480
    %1398 = vmatpush1.bf16.msra.mxu0 %v479
    %1399 = vmatprep.subr.bf16.mxu0 %v486
    %1400 = vmatpush1.bf16.msra.mxu0 %v485
    %1401 = vmatprep.subr.bf16.mxu0 %v492
    %1402 = vmatpush1.bf16.msra.mxu0 %v491
    %1403 = vmatprep.subr.bf16.mxu0 %v498
    %1404 = vmatpush1.bf16.msra.mxu0 %v497
    %1405 = vmatprep.subr.bf16.mxu0 %v504
    %1406 = vmatpush1.bf16.msra.mxu0 %v503
    %1407 = vmatprep.subr.bf16.mxu0 %v510
    %1408 = vmatpush1.bf16.msra.mxu0 %v509
    %1409 = vmatprep.subr.bf16.mxu0 %v516
    %1410 = vmatpush1.bf16.msra.mxu0 %v515
    %1411 = vmatprep.subr.bf16.mxu0 %v522
    %1412 = vmatpush1.bf16.msra.mxu0 %v521
    %1413 = vmatprep.subr.bf16.mxu0 %v528
    %1414 = vmatpush1.bf16.msra.mxu0 %v527
    %1415 = vmatprep.subr.bf16.mxu0 %v534
    %1416 = vmatpush1.bf16.msra.mxu0 %v533
    %1417 = vmatprep.subr.bf16.mxu0 %v540
    %1418 = vmatpush1.bf16.msra.mxu0 %v539
    %1419 = vmatprep.subr.bf16.mxu0 %v546
    %1420 = vmatpush1.bf16.msra.mxu0 %v545
    %1421 = vmatprep.subr.bf16.mxu0 %v552
    %1422 = vmatpush1.bf16.msra.mxu0 %v551
    %1423 = vmatprep.subr.bf16.mxu0 %v558
    %1424 = vmatpush1.bf16.msra.mxu0 %v557
    %1425 = vmatprep.subr.bf16.mxu0 %v564
    %1426 = vmatpush1.bf16.msra.mxu0 %v563
    %1427 = vmatprep.mubr.bf16.mxu0 %v1394
    %1428 = vmatmul.mubr.bf16.gmra.mrb[0].mxu0 %v1393
    %v1429 = vpop.f32.mrb[0].mxu0
    %v1430 = vadd.f32 %v669, %v1429
    %v1431 = vpop.f32.mrb[0].mxu0
    %v1432 = vadd.f32 %v673, %v1431
    %v1433 = vpop.f32.mrb[0].mxu0
    %v1434 = vpop.f32.mrb[0].mxu0
    %1435 = vdwg.mxu0
    %1436 = vmatprep.subr.bf16.mxu0 %v476
    %1437 = vmatpush1.bf16.msra.mxu0 %v475
    %1438 = vmatprep.subr.bf16.mxu0 %v482
    %1439 = vmatpush1.bf16.msra.mxu0 %v481
    %1440 = vmatprep.subr.bf16.mxu0 %v488
    %1441 = vmatpush1.bf16.msra.mxu0 %v487
    %1442 = vmatprep.subr.bf16.mxu0 %v494
    %1443 = vmatpush1.bf16.msra.mxu0 %v493
    %1444 = vmatprep.subr.bf16.mxu0 %v500
    %1445 = vmatpush1.bf16.msra.mxu0 %v499
    %1446 = vmatprep.subr.bf16.mxu0 %v506
    %1447 = vmatpush1.bf16.msra.mxu0 %v505
    %1448 = vmatprep.subr.bf16.mxu0 %v512
    %1449 = vmatpush1.bf16.msra.mxu0 %v511
    %1450 = vmatprep.subr.bf16.mxu0 %v518
    %1451 = vmatpush1.bf16.msra.mxu0 %v517
    %1452 = vmatprep.subr.bf16.mxu0 %v524
    %1453 = vmatpush1.bf16.msra.mxu0 %v523
    %1454 = vmatprep.subr.bf16.mxu0 %v530
    %1455 = vmatpush1.bf16.msra.mxu0 %v529
    %1456 = vmatprep.subr.bf16.mxu0 %v536
    %1457 = vmatpush1.bf16.msra.mxu0 %v535
    %1458 = vmatprep.subr.bf16.mxu0 %v542
    %1459 = vmatpush1.bf16.msra.mxu0 %v541
    %1460 = vmatprep.subr.bf16.mxu0 %v548
    %1461 = vmatpush1.bf16.msra.mxu0 %v547
    %1462 = vmatprep.subr.bf16.mxu0 %v554
    %1463 = vmatpush1.bf16.msra.mxu0 %v553
    %1464 = vmatprep.subr.bf16.mxu0 %v560
    %1465 = vmatpush1.bf16.msra.mxu0 %v559
    %1466 = vmatprep.subr.bf16.mxu0 %v566
    %1467 = vmatpush1.bf16.msra.mxu0 %v565
    %1468 = vmatprep.mubr.bf16.mxu0 %v1394
    %1469 = vmatmul.mubr.bf16.gmra.mrb[0].mxu0 %v1393
    %v1470 = vpop.f32.mrb[0].mxu0
    %v1471 = vadd.f32 %v677, %v1470
    %v1472 = vpop.f32.mrb[0].mxu0
    %v1473 = vadd.f32 %v681, %v1472
    %v1474 = vpop.f32.mrb[0].mxu0
    %v1475 = vpop.f32.mrb[0].mxu0
    %1476 = vdwg.mxu0
    %1477 = vmatprep.subr.bf16.mxu0 %v478
    %1478 = vmatpush1.bf16.msra.mxu0 %v477
    %1479 = vmatprep.subr.bf16.mxu0 %v484
    %1480 = vmatpush1.bf16.msra.mxu0 %v483
    %1481 = vmatprep.subr.bf16.mxu0 %v490
    %1482 = vmatpush1.bf16.msra.mxu0 %v489
    %1483 = vmatprep.subr.bf16.mxu0 %v496
    %1484 = vmatpush1.bf16.msra.mxu0 %v495
    %1485 = vmatprep.subr.bf16.mxu0 %v502
    %1486 = vmatpush1.bf16.msra.mxu0 %v501
    %1487 = vmatprep.subr.bf16.mxu0 %v508
    %1488 = vmatpush1.bf16.msra.mxu0 %v507
    %1489 = vmatprep.subr.bf16.mxu0 %v514
    %1490 = vmatpush1.bf16.msra.mxu0 %v513
    %1491 = vmatprep.subr.bf16.mxu0 %v520
    %1492 = vmatpush1.bf16.msra.mxu0 %v519
    %1493 = vmatprep.subr.bf16.mxu0 %v526
    %1494 = vmatpush1.bf16.msra.mxu0 %v525
    %1495 = vmatprep.subr.bf16.mxu0 %v532
    %1496 = vmatpush1.bf16.msra.mxu0 %v531
    %1497 = vmatprep.subr.bf16.mxu0 %v538
    %1498 = vmatpush1.bf16.msra.mxu0 %v537
    %1499 = vmatprep.subr.bf16.mxu0 %v544
    %1500 = vmatpush1.bf16.msra.mxu0 %v543
    %1501 = vmatprep.subr.bf16.mxu0 %v550
    %1502 = vmatpush1.bf16.msra.mxu0 %v549
    %1503 = vmatprep.subr.bf16.mxu0 %v556
    %1504 = vmatpush1.bf16.msra.mxu0 %v555
    %1505 = vmatprep.subr.bf16.mxu0 %v562
    %1506 = vmatpush1.bf16.msra.mxu0 %v561
    %1507 = vmatprep.subr.bf16.mxu0 %v568
    %1508 = vmatpush1.bf16.msra.mxu0 %v567
    %1509 = vmatprep.mubr.bf16.mxu0 %v1394
    %1510 = vmatmul.mubr.bf16.gmra.mrb[0].mxu0 %v1393
    %v1511 = vpop.f32.mrb[0].mxu0
    %v1512 = vadd.f32 %v685, %v1511
    %v1513 = vpop.f32.mrb[0].mxu0
    %v1514 = vadd.f32 %v689, %v1513
    %v1515 = vpop.f32.mrb[0].mxu0
    %v1516 = vpop.f32.mrb[0].mxu0
    %1517 = vdwg.mxu0
    %v1520 = vcombine.low %v1430, %v1432
    %v1522 = vunpack.c.l.s4 1966171168
    %v1523 = vunpack.c.0.s8 %v1522
    %v1524 = vlaneseq
    %v1525 = vshrl.u32 %v1524, 7
    %v1526 = vsub.s32 %v1523, %v1525
    %v1527 = vrot.slane %v1520, %v1526
    %v1529 = vunpack.c.l.s4 1966171168
    %v1530 = vunpack.c.0.s8 %v1529
    %v1531 = vlaneseq
    %v1532 = vshrl.u32 %v1531, 7
    %v1533 = vsub.s32 %v1530, %v1532
    %v1534 = vrot.slane %v1527, %v1533
    %v1536 = vadd.f32 %v1381, %v1534
    %v1537 = vxor.u32 %v1536, 2147483648
    %v1538 = vmul.f32 %v1537, 1.442695
    %v1539 = vpow.pop %v1538
    %v1540 = vadd.f32 %v1539, 1.0
    %v1541 = vrcp.pop %v1540
    %v1542 = vmul.f32 1.0, %v1541
    %v1544 = vrot.slane %v1381, 2
    %v1548 = vcombine.low %v1471, %v1473
    %v1550 = vunpack.c.l.s4 1966171168
    %v1551 = vunpack.c.0.s8 %v1550
    %v1552 = vlaneseq
    %v1553 = vshrl.u32 %v1552, 7
    %v1554 = vsub.s32 %v1551, %v1553
    %v1555 = vrot.slane %v1548, %v1554
    %v1557 = vunpack.c.l.s4 1966171168
    %v1558 = vunpack.c.0.s8 %v1557
    %v1559 = vlaneseq
    %v1560 = vshrl.u32 %v1559, 7
    %v1561 = vsub.s32 %v1558, %v1560
    %v1562 = vrot.slane %v1555, %v1561
    %v1564 = vadd.f32 %v1544, %v1562
    %v1565 = vxor.u32 %v1564, 2147483648
    %v1566 = vmul.f32 %v1565, 1.442695
    %v1567 = vpow.pop %v1566
    %v1568 = vadd.f32 %v1567, 1.0
    %v1569 = vrcp.pop %v1568
    %v1570 = vmul.f32 1.0, %v1569
    %v1573 = vcombine.low %v1512, %v1514
    %v1575 = vunpack.c.l.s4 1966171168
    %v1576 = vunpack.c.0.s8 %v1575
    %v1577 = vlaneseq
    %v1578 = vshrl.u32 %v1577, 7
    %v1579 = vsub.s32 %v1576, %v1578
    %v1580 = vrot.slane %v1573, %v1579
    %v1582 = vunpack.c.l.s4 1966171168
    %v1583 = vunpack.c.0.s8 %v1582
    %v1584 = vlaneseq
    %v1585 = vshrl.u32 %v1584, 7
    %v1586 = vsub.s32 %v1583, %v1585
    %v1587 = vrot.slane %v1580, %v1586
    %v1589 = vmul.f32 %v1542, %v1587
    %v1590 = vrot.slane %v1381, 4
    %v1592 = vadd.f32 %v1590, %v1589
    %v1593 = vtanh.pop %v1592
    %v1594 = vsub.f32 1.0, %v1570
    %v1595 = vmul.f32 %v1594, %v1593
    %v1596 = vmul.f32 %v1570, %v1365
    %v1597 = vadd.f32 %v1595, %v1596
    %s1598 = scalar_lea.vmem [#allocation10], 3
    %1599 = vst.msk [vmem:[%s1598] ss:$8 sm:$0x3] %vm902, %v1597
    %1600 = vst.msk [vmem:[%s1598] ss:$8 sm:$0x0] %vm902, %v1597
    %s1601 = sadd.s32 %s159, 4
    %s1602 = sld [smem:[#allocation4 + %s1601]]
    %s1603 = sshra.s32 %s1602, 3
    %s1604 = sand.u32 %s1602, 7
    %s1605 = sshra.s32 %s1602, 3
    %s1606 = sand.u32 %s1602, 7
    %s1607 = smul.u32 %s1603, 6
    %s1608 = smul.u32 %s1607, 8
    %s1609 = sadd.s32 %s1608, %s1606
    %s1610 = scalar_lea.vmem [#allocation5], %s1609
    %v1611 = vld [vmem:[%s1610] ss:$8 sm:$0xf]
    %v1612 = vld [vmem:[%s1610] ss:$8 sm:$0x30]
    %v1613 = vor.u32 %v1611, %v1612
    %v1615 = vlaneseq
    %v1616 = vshrl.u32 %v1615, 7
    %v1617 = vsub.s32 0, %v1616
    %v1618 = vrot.slane %v1597, %v1617
    %v1619 = vlaneseq
    %v1620 = vshrl.u32 %v1619, 7
    %v1621 = vsub.s32 1, %v1620
    %v1622 = vrot.slane %v1597, %v1621
    %v1625 = vpack.c.bf16 %v1618, %v1618
    %v1626 = vpack.c.bf16 %v1622, %v1622
    %1627 = vmatprep.subr.bf16.mxu0 %v474
    %1628 = vmatpush1.bf16.msra.mxu0 %v473
    %1629 = vmatprep.subr.bf16.mxu0 %v480
    %1630 = vmatpush1.bf16.msra.mxu0 %v479
    %1631 = vmatprep.subr.bf16.mxu0 %v486
    %1632 = vmatpush1.bf16.msra.mxu0 %v485
    %1633 = vmatprep.subr.bf16.mxu0 %v492
    %1634 = vmatpush1.bf16.msra.mxu0 %v491
    %1635 = vmatprep.subr.bf16.mxu0 %v498
    %1636 = vmatpush1.bf16.msra.mxu0 %v497
    %1637 = vmatprep.subr.bf16.mxu0 %v504
    %1638 = vmatpush1.bf16.msra.mxu0 %v503
    %1639 = vmatprep.subr.bf16.mxu0 %v510
    %1640 = vmatpush1.bf16.msra.mxu0 %v509
    %1641 = vmatprep.subr.bf16.mxu0 %v516
    %1642 = vmatpush1.bf16.msra.mxu0 %v515
    %1643 = vmatprep.subr.bf16.mxu0 %v522
    %1644 = vmatpush1.bf16.msra.mxu0 %v521
    %1645 = vmatprep.subr.bf16.mxu0 %v528
    %1646 = vmatpush1.bf16.msra.mxu0 %v527
    %1647 = vmatprep.subr.bf16.mxu0 %v534
    %1648 = vmatpush1.bf16.msra.mxu0 %v533
    %1649 = vmatprep.subr.bf16.mxu0 %v540
    %1650 = vmatpush1.bf16.msra.mxu0 %v539
    %1651 = vmatprep.subr.bf16.mxu0 %v546
    %1652 = vmatpush1.bf16.msra.mxu0 %v545
    %1653 = vmatprep.subr.bf16.mxu0 %v552
    %1654 = vmatpush1.bf16.msra.mxu0 %v551
    %1655 = vmatprep.subr.bf16.mxu0 %v558
    %1656 = vmatpush1.bf16.msra.mxu0 %v557
    %1657 = vmatprep.subr.bf16.mxu0 %v564
    %1658 = vmatpush1.bf16.msra.mxu0 %v563
    %1659 = vmatprep.mubr.bf16.mxu0 %v1626
    %1660 = vmatmul.mubr.bf16.gmra.mrb[0].mxu0 %v1625
    %v1661 = vpop.f32.mrb[0].mxu0
    %v1662 = vadd.f32 %v669, %v1661
    %v1663 = vpop.f32.mrb[0].mxu0
    %v1664 = vadd.f32 %v673, %v1663
    %v1665 = vpop.f32.mrb[0].mxu0
    %v1666 = vpop.f32.mrb[0].mxu0
    %1667 = vdwg.mxu0
    %1668 = vmatprep.subr.bf16.mxu0 %v476
    %1669 = vmatpush1.bf16.msra.mxu0 %v475
    %1670 = vmatprep.subr.bf16.mxu0 %v482
    %1671 = vmatpush1.bf16.msra.mxu0 %v481
    %1672 = vmatprep.subr.bf16.mxu0 %v488
    %1673 = vmatpush1.bf16.msra.mxu0 %v487
    %1674 = vmatprep.subr.bf16.mxu0 %v494
    %1675 = vmatpush1.bf16.msra.mxu0 %v493
    %1676 = vmatprep.subr.bf16.mxu0 %v500
    %1677 = vmatpush1.bf16.msra.mxu0 %v499
    %1678 = vmatprep.subr.bf16.mxu0 %v506
    %1679 = vmatpush1.bf16.msra.mxu0 %v505
    %1680 = vmatprep.subr.bf16.mxu0 %v512
    %1681 = vmatpush1.bf16.msra.mxu0 %v511
    %1682 = vmatprep.subr.bf16.mxu0 %v518
    %1683 = vmatpush1.bf16.msra.mxu0 %v517
    %1684 = vmatprep.subr.bf16.mxu0 %v524
    %1685 = vmatpush1.bf16.msra.mxu0 %v523
    %1686 = vmatprep.subr.bf16.mxu0 %v530
    %1687 = vmatpush1.bf16.msra.mxu0 %v529
    %1688 = vmatprep.subr.bf16.mxu0 %v536
    %1689 = vmatpush1.bf16.msra.mxu0 %v535
    %1690 = vmatprep.subr.bf16.mxu0 %v542
    %1691 = vmatpush1.bf16.msra.mxu0 %v541
    %1692 = vmatprep.subr.bf16.mxu0 %v548
    %1693 = vmatpush1.bf16.msra.mxu0 %v547
    %1694 = vmatprep.subr.bf16.mxu0 %v554
    %1695 = vmatpush1.bf16.msra.mxu0 %v553
    %1696 = vmatprep.subr.bf16.mxu0 %v560
    %1697 = vmatpush1.bf16.msra.mxu0 %v559
    %1698 = vmatprep.subr.bf16.mxu0 %v566
    %1699 = vmatpush1.bf16.msra.mxu0 %v565
    %1700 = vmatprep.mubr.bf16.mxu0 %v1626
    %1701 = vmatmul.mubr.bf16.gmra.mrb[0].mxu0 %v1625
    %v1702 = vpop.f32.mrb[0].mxu0
    %v1703 = vadd.f32 %v677, %v1702
    %v1704 = vpop.f32.mrb[0].mxu0
    %v1705 = vadd.f32 %v681, %v1704
    %v1706 = vpop.f32.mrb[0].mxu0
    %v1707 = vpop.f32.mrb[0].mxu0
    %1708 = vdwg.mxu0
    %1709 = vmatprep.subr.bf16.mxu0 %v478
    %1710 = vmatpush1.bf16.msra.mxu0 %v477
    %1711 = vmatprep.subr.bf16.mxu0 %v484
    %1712 = vmatpush1.bf16.msra.mxu0 %v483
    %1713 = vmatprep.subr.bf16.mxu0 %v490
    %1714 = vmatpush1.bf16.msra.mxu0 %v489
    %1715 = vmatprep.subr.bf16.mxu0 %v496
    %1716 = vmatpush1.bf16.msra.mxu0 %v495
    %1717 = vmatprep.subr.bf16.mxu0 %v502
    %1718 = vmatpush1.bf16.msra.mxu0 %v501
    %1719 = vmatprep.subr.bf16.mxu0 %v508
    %1720 = vmatpush1.bf16.msra.mxu0 %v507
    %1721 = vmatprep.subr.bf16.mxu0 %v514
    %1722 = vmatpush1.bf16.msra.mxu0 %v513
    %1723 = vmatprep.subr.bf16.mxu0 %v520
    %1724 = vmatpush1.bf16.msra.mxu0 %v519
    %1725 = vmatprep.subr.bf16.mxu0 %v526
    %1726 = vmatpush1.bf16.msra.mxu0 %v525
    %1727 = vmatprep.subr.bf16.mxu0 %v532
    %1728 = vmatpush1.bf16.msra.mxu0 %v531
    %1729 = vmatprep.subr.bf16.mxu0 %v538
    %1730 = vmatpush1.bf16.msra.mxu0 %v537
    %1731 = vmatprep.subr.bf16.mxu0 %v544
    %1732 = vmatpush1.bf16.msra.mxu0 %v543
    %1733 = vmatprep.subr.bf16.mxu0 %v550
    %1734 = vmatpush1.bf16.msra.mxu0 %v549
    %1735 = vmatprep.subr.bf16.mxu0 %v556
    %1736 = vmatpush1.bf16.msra.mxu0 %v555
    %1737 = vmatprep.subr.bf16.mxu0 %v562
    %1738 = vmatpush1.bf16.msra.mxu0 %v561
    %1739 = vmatprep.subr.bf16.mxu0 %v568
    %1740 = vmatpush1.bf16.msra.mxu0 %v567
    %1741 = vmatprep.mubr.bf16.mxu0 %v1626
    %1742 = vmatmul.mubr.bf16.gmra.mrb[0].mxu0 %v1625
    %v1743 = vpop.f32.mrb[0].mxu0
    %v1744 = vadd.f32 %v685, %v1743
    %v1745 = vpop.f32.mrb[0].mxu0
    %v1746 = vadd.f32 %v689, %v1745
    %v1747 = vpop.f32.mrb[0].mxu0
    %v1748 = vpop.f32.mrb[0].mxu0
    %1749 = vdwg.mxu0
    %v1752 = vcombine.low %v1662, %v1664
    %v1754 = vunpack.c.l.s4 1966171168
    %v1755 = vunpack.c.0.s8 %v1754
    %v1756 = vlaneseq
    %v1757 = vshrl.u32 %v1756, 7
    %v1758 = vsub.s32 %v1755, %v1757
    %v1759 = vrot.slane %v1752, %v1758
    %v1761 = vunpack.c.l.s4 1966171168
    %v1762 = vunpack.c.0.s8 %v1761
    %v1763 = vlaneseq
    %v1764 = vshrl.u32 %v1763, 7
    %v1765 = vsub.s32 %v1762, %v1764
    %v1766 = vrot.slane %v1759, %v1765
    %v1768 = vadd.f32 %v1613, %v1766
    %v1769 = vxor.u32 %v1768, 2147483648
    %v1770 = vmul.f32 %v1769, 1.442695
    %v1771 = vpow.pop %v1770
    %v1772 = vadd.f32 %v1771, 1.0
    %v1773 = vrcp.pop %v1772
    %v1774 = vmul.f32 1.0, %v1773
    %v1776 = vrot.slane %v1613, 2
    %v1780 = vcombine.low %v1703, %v1705
    %v1782 = vunpack.c.l.s4 1966171168
    %v1783 = vunpack.c.0.s8 %v1782
    %v1784 = vlaneseq
    %v1785 = vshrl.u32 %v1784, 7
    %v1786 = vsub.s32 %v1783, %v1785
    %v1787 = vrot.slane %v1780, %v1786
    %v1789 = vunpack.c.l.s4 1966171168
    %v1790 = vunpack.c.0.s8 %v1789
    %v1791 = vlaneseq
    %v1792 = vshrl.u32 %v1791, 7
    %v1793 = vsub.s32 %v1790, %v1792
    %v1794 = vrot.slane %v1787, %v1793
    %v1796 = vadd.f32 %v1776, %v1794
    %v1797 = vxor.u32 %v1796, 2147483648
    %v1798 = vmul.f32 %v1797, 1.442695
    %v1799 = vpow.pop %v1798
    %v1800 = vadd.f32 %v1799, 1.0
    %v1801 = vrcp.pop %v1800
    %v1802 = vmul.f32 1.0, %v1801
    %v1805 = vcombine.low %v1744, %v1746
    %v1807 = vunpack.c.l.s4 1966171168
    %v1808 = vunpack.c.0.s8 %v1807
    %v1809 = vlaneseq
    %v1810 = vshrl.u32 %v1809, 7
    %v1811 = vsub.s32 %v1808, %v1810
    %v1812 = vrot.slane %v1805, %v1811
    %v1814 = vunpack.c.l.s4 1966171168
    %v1815 = vunpack.c.0.s8 %v1814
    %v1816 = vlaneseq
    %v1817 = vshrl.u32 %v1816, 7
    %v1818 = vsub.s32 %v1815, %v1817
    %v1819 = vrot.slane %v1812, %v1818
    %v1821 = vmul.f32 %v1774, %v1819
    %v1822 = vrot.slane %v1613, 4
    %v1824 = vadd.f32 %v1822, %v1821
    %v1825 = vtanh.pop %v1824
    %v1826 = vsub.f32 1.0, %v1802
    %v1827 = vmul.f32 %v1826, %v1825
    %v1828 = vmul.f32 %v1802, %v1597
    %v1829 = vadd.f32 %v1827, %v1828
    %s1830 = scalar_lea.vmem [#allocation10], 4
    %1831 = vst.msk [vmem:[%s1830] ss:$8 sm:$0x3] %vm902, %v1829
    %1832 = vst.msk [vmem:[%s1830] ss:$8 sm:$0x0] %vm902, %v1829
    %s1833 = sadd.s32 %s159, 5
    %s1834 = sld [smem:[#allocation4 + %s1833]]
    %s1835 = sshra.s32 %s1834, 3
    %s1836 = sand.u32 %s1834, 7
    %s1837 = sshra.s32 %s1834, 3
    %s1838 = sand.u32 %s1834, 7
    %s1839 = smul.u32 %s1835, 6
    %s1840 = smul.u32 %s1839, 8
    %s1841 = sadd.s32 %s1840, %s1838
    %s1842 = scalar_lea.vmem [#allocation5], %s1841
    %v1843 = vld [vmem:[%s1842] ss:$8 sm:$0xf]
    %v1844 = vld [vmem:[%s1842] ss:$8 sm:$0x30]
    %v1845 = vor.u32 %v1843, %v1844
    %v1847 = vlaneseq
    %v1848 = vshrl.u32 %v1847, 7
    %v1849 = vsub.s32 0, %v1848
    %v1850 = vrot.slane %v1829, %v1849
    %v1851 = vlaneseq
    %v1852 = vshrl.u32 %v1851, 7
    %v1853 = vsub.s32 1, %v1852
    %v1854 = vrot.slane %v1829, %v1853
    %v1857 = vpack.c.bf16 %v1850, %v1850
    %v1858 = vpack.c.bf16 %v1854, %v1854
    %1859 = vmatprep.subr.bf16.mxu0 %v474
    %1860 = vmatpush1.bf16.msra.mxu0 %v473
    %1861 = vmatprep.subr.bf16.mxu0 %v480
    %1862 = vmatpush1.bf16.msra.mxu0 %v479
    %1863 = vmatprep.subr.bf16.mxu0 %v486
    %1864 = vmatpush1.bf16.msra.mxu0 %v485
    %1865 = vmatprep.subr.bf16.mxu0 %v492
    %1866 = vmatpush1.bf16.msra.mxu0 %v491
    %1867 = vmatprep.subr.bf16.mxu0 %v498
    %1868 = vmatpush1.bf16.msra.mxu0 %v497
    %1869 = vmatprep.subr.bf16.mxu0 %v504
    %1870 = vmatpush1.bf16.msra.mxu0 %v503
    %1871 = vmatprep.subr.bf16.mxu0 %v510
    %1872 = vmatpush1.bf16.msra.mxu0 %v509
    %1873 = vmatprep.subr.bf16.mxu0 %v516
    %1874 = vmatpush1.bf16.msra.mxu0 %v515
    %1875 = vmatprep.subr.bf16.mxu0 %v522
    %1876 = vmatpush1.bf16.msra.mxu0 %v521
    %1877 = vmatprep.subr.bf16.mxu0 %v528
    %1878 = vmatpush1.bf16.msra.mxu0 %v527
    %1879 = vmatprep.subr.bf16.mxu0 %v534
    %1880 = vmatpush1.bf16.msra.mxu0 %v533
    %1881 = vmatprep.subr.bf16.mxu0 %v540
    %1882 = vmatpush1.bf16.msra.mxu0 %v539
    %1883 = vmatprep.subr.bf16.mxu0 %v546
    %1884 = vmatpush1.bf16.msra.mxu0 %v545
    %1885 = vmatprep.subr.bf16.mxu0 %v552
    %1886 = vmatpush1.bf16.msra.mxu0 %v551
    %1887 = vmatprep.subr.bf16.mxu0 %v558
    %1888 = vmatpush1.bf16.msra.mxu0 %v557
    %1889 = vmatprep.subr.bf16.mxu0 %v564
    %1890 = vmatpush1.bf16.msra.mxu0 %v563
    %1891 = vmatprep.mubr.bf16.mxu0 %v1858
    %1892 = vmatmul.mubr.bf16.gmra.mrb[0].mxu0 %v1857
    %v1893 = vpop.f32.mrb[0].mxu0
    %v1894 = vadd.f32 %v669, %v1893
    %v1895 = vpop.f32.mrb[0].mxu0
    %v1896 = vadd.f32 %v673, %v1895
    %v1897 = vpop.f32.mrb[0].mxu0
    %v1898 = vpop.f32.mrb[0].mxu0
    %1899 = vdwg.mxu0
    %1900 = vmatprep.subr.bf16.mxu0 %v476
    %1901 = vmatpush1.bf16.msra.mxu0 %v475
    %1902 = vmatprep.subr.bf16.mxu0 %v482
    %1903 = vmatpush1.bf16.msra.mxu0 %v481
    %1904 = vmatprep.subr.bf16.mxu0 %v488
    %1905 = vmatpush1.bf16.msra.mxu0 %v487
    %1906 = vmatprep.subr.bf16.mxu0 %v494
    %1907 = vmatpush1.bf16.msra.mxu0 %v493
    %1908 = vmatprep.subr.bf16.mxu0 %v500
    %1909 = vmatpush1.bf16.msra.mxu0 %v499
    %1910 = vmatprep.subr.bf16.mxu0 %v506
    %1911 = vmatpush1.bf16.msra.mxu0 %v505
    %1912 = vmatprep.subr.bf16.mxu0 %v512
    %1913 = vmatpush1.bf16.msra.mxu0 %v511
    %1914 = vmatprep.subr.bf16.mxu0 %v518
    %1915 = vmatpush1.bf16.msra.mxu0 %v517
    %1916 = vmatprep.subr.bf16.mxu0 %v524
    %1917 = vmatpush1.bf16.msra.mxu0 %v523
    %1918 = vmatprep.subr.bf16.mxu0 %v530
    %1919 = vmatpush1.bf16.msra.mxu0 %v529
    %1920 = vmatprep.subr.bf16.mxu0 %v536
    %1921 = vmatpush1.bf16.msra.mxu0 %v535
    %1922 = vmatprep.subr.bf16.mxu0 %v542
    %1923 = vmatpush1.bf16.msra.mxu0 %v541
    %1924 = vmatprep.subr.bf16.mxu0 %v548
    %1925 = vmatpush1.bf16.msra.mxu0 %v547
    %1926 = vmatprep.subr.bf16.mxu0 %v554
    %1927 = vmatpush1.bf16.msra.mxu0 %v553
    %1928 = vmatprep.subr.bf16.mxu0 %v560
    %1929 = vmatpush1.bf16.msra.mxu0 %v559
    %1930 = vmatprep.subr.bf16.mxu0 %v566
    %1931 = vmatpush1.bf16.msra.mxu0 %v565
    %1932 = vmatprep.mubr.bf16.mxu0 %v1858
    %1933 = vmatmul.mubr.bf16.gmra.mrb[0].mxu0 %v1857
    %v1934 = vpop.f32.mrb[0].mxu0
    %v1935 = vadd.f32 %v677, %v1934
    %v1936 = vpop.f32.mrb[0].mxu0
    %v1937 = vadd.f32 %v681, %v1936
    %v1938 = vpop.f32.mrb[0].mxu0
    %v1939 = vpop.f32.mrb[0].mxu0
    %1940 = vdwg.mxu0
    %1941 = vmatprep.subr.bf16.mxu0 %v478
    %1942 = vmatpush1.bf16.msra.mxu0 %v477
    %1943 = vmatprep.subr.bf16.mxu0 %v484
    %1944 = vmatpush1.bf16.msra.mxu0 %v483
    %1945 = vmatprep.subr.bf16.mxu0 %v490
    %1946 = vmatpush1.bf16.msra.mxu0 %v489
    %1947 = vmatprep.subr.bf16.mxu0 %v496
    %1948 = vmatpush1.bf16.msra.mxu0 %v495
    %1949 = vmatprep.subr.bf16.mxu0 %v502
    %1950 = vmatpush1.bf16.msra.mxu0 %v501
    %1951 = vmatprep.subr.bf16.mxu0 %v508
    %1952 = vmatpush1.bf16.msra.mxu0 %v507
    %1953 = vmatprep.subr.bf16.mxu0 %v514
    %1954 = vmatpush1.bf16.msra.mxu0 %v513
    %1955 = vmatprep.subr.bf16.mxu0 %v520
    %1956 = vmatpush1.bf16.msra.mxu0 %v519
    %1957 = vmatprep.subr.bf16.mxu0 %v526
    %1958 = vmatpush1.bf16.msra.mxu0 %v525
    %1959 = vmatprep.subr.bf16.mxu0 %v532
    %1960 = vmatpush1.bf16.msra.mxu0 %v531
    %1961 = vmatprep.subr.bf16.mxu0 %v538
    %1962 = vmatpush1.bf16.msra.mxu0 %v537
    %1963 = vmatprep.subr.bf16.mxu0 %v544
    %1964 = vmatpush1.bf16.msra.mxu0 %v543
    %1965 = vmatprep.subr.bf16.mxu0 %v550
    %1966 = vmatpush1.bf16.msra.mxu0 %v549
    %1967 = vmatprep.subr.bf16.mxu0 %v556
    %1968 = vmatpush1.bf16.msra.mxu0 %v555
    %1969 = vmatprep.subr.bf16.mxu0 %v562
    %1970 = vmatpush1.bf16.msra.mxu0 %v561
    %1971 = vmatprep.subr.bf16.mxu0 %v568
    %1972 = vmatpush1.bf16.msra.mxu0 %v567
    %1973 = vmatprep.mubr.bf16.mxu0 %v1858
    %1974 = vmatmul.mubr.bf16.gmra.mrb[0].mxu0 %v1857
    %v1975 = vpop.f32.mrb[0].mxu0
    %v1976 = vadd.f32 %v685, %v1975
    %v1977 = vpop.f32.mrb[0].mxu0
    %v1978 = vadd.f32 %v689, %v1977
    %v1979 = vpop.f32.mrb[0].mxu0
    %v1980 = vpop.f32.mrb[0].mxu0
    %1981 = vdwg.mxu0
    %v1984 = vcombine.low %v1894, %v1896
    %v1986 = vunpack.c.l.s4 1966171168
    %v1987 = vunpack.c.0.s8 %v1986
    %v1988 = vlaneseq
    %v1989 = vshrl.u32 %v1988, 7
    %v1990 = vsub.s32 %v1987, %v1989
    %v1991 = vrot.slane %v1984, %v1990
    %v1993 = vunpack.c.l.s4 1966171168
    %v1994 = vunpack.c.0.s8 %v1993
    %v1995 = vlaneseq
    %v1996 = vshrl.u32 %v1995, 7
    %v1997 = vsub.s32 %v1994, %v1996
    %v1998 = vrot.slane %v1991, %v1997
    %v2000 = vadd.f32 %v1845, %v1998
    %v2001 = vxor.u32 %v2000, 2147483648
    %v2002 = vmul.f32 %v2001, 1.442695
    %v2003 = vpow.pop %v2002
    %v2004 = vadd.f32 %v2003, 1.0
    %v2005 = vrcp.pop %v2004
    %v2006 = vmul.f32 1.0, %v2005
    %v2008 = vrot.slane %v1845, 2
    %v2012 = vcombine.low %v1935, %v1937
    %v2014 = vunpack.c.l.s4 1966171168
    %v2015 = vunpack.c.0.s8 %v2014
    %v2016 = vlaneseq
    %v2017 = vshrl.u32 %v2016, 7
    %v2018 = vsub.s32 %v2015, %v2017
    %v2019 = vrot.slane %v2012, %v2018
    %v2021 = vunpack.c.l.s4 1966171168
    %v2022 = vunpack.c.0.s8 %v2021
    %v2023 = vlaneseq
    %v2024 = vshrl.u32 %v2023, 7
    %v2025 = vsub.s32 %v2022, %v2024
    %v2026 = vrot.slane %v2019, %v2025
    %v2028 = vadd.f32 %v2008, %v2026
    %v2029 = vxor.u32 %v2028, 2147483648
    %v2030 = vmul.f32 %v2029, 1.442695
    %v2031 = vpow.pop %v2030
    %v2032 = vadd.f32 %v2031, 1.0
    %v2033 = vrcp.pop %v2032
    %v2034 = vmul.f32 1.0, %v2033
    %v2037 = vcombine.low %v1976, %v1978
    %v2039 = vunpack.c.l.s4 1966171168
    %v2040 = vunpack.c.0.s8 %v2039
    %v2041 = vlaneseq
    %v2042 = vshrl.u32 %v2041, 7
    %v2043 = vsub.s32 %v2040, %v2042
    %v2044 = vrot.slane %v2037, %v2043
    %v2046 = vunpack.c.l.s4 1966171168
    %v2047 = vunpack.c.0.s8 %v2046
    %v2048 = vlaneseq
    %v2049 = vshrl.u32 %v2048, 7
    %v2050 = vsub.s32 %v2047, %v2049
    %v2051 = vrot.slane %v2044, %v2050
    %v2053 = vmul.f32 %v2006, %v2051
    %v2054 = vrot.slane %v1845, 4
    %v2056 = vadd.f32 %v2054, %v2053
    %v2057 = vtanh.pop %v2056
    %v2058 = vsub.f32 1.0, %v2034
    %v2059 = vmul.f32 %v2058, %v2057
    %v2060 = vmul.f32 %v2034, %v1829
    %v2061 = vadd.f32 %v2059, %v2060
    %s2062 = scalar_lea.vmem [#allocation10], 5
    %2063 = vst.msk [vmem:[%s2062] ss:$8 sm:$0x3] %vm902, %v2061
    %2064 = vst.msk [vmem:[%s2062] ss:$8 sm:$0x0] %vm902, %v2061
    %s2065 = sadd.s32 %s159, 6
    %s2066 = sld [smem:[#allocation4 + %s2065]]
    %s2067 = sshra.s32 %s2066, 3
    %s2068 = sand.u32 %s2066, 7
    %s2069 = sshra.s32 %s2066, 3
    %s2070 = sand.u32 %s2066, 7
    %s2071 = smul.u32 %s2067, 6
    %s2072 = smul.u32 %s2071, 8
    %s2073 = sadd.s32 %s2072, %s2070
    %s2074 = scalar_lea.vmem [#allocation5], %s2073
    %v2075 = vld [vmem:[%s2074] ss:$8 sm:$0xf]
    %v2076 = vld [vmem:[%s2074] ss:$8 sm:$0x30]
    %v2077 = vor.u32 %v2075, %v2076
    %v2079 = vlaneseq
    %v2080 = vshrl.u32 %v2079, 7
    %v2081 = vsub.s32 0, %v2080
    %v2082 = vrot.slane %v2061, %v2081
    %v2083 = vlaneseq
    %v2084 = vshrl.u32 %v2083, 7
    %v2085 = vsub.s32 1, %v2084
    %v2086 = vrot.slane %v2061, %v2085
    %v2089 = vpack.c.bf16 %v2082, %v2082
    %v2090 = vpack.c.bf16 %v2086, %v2086
    %2091 = vmatprep.subr.bf16.mxu0 %v474
    %2092 = vmatpush1.bf16.msra.mxu0 %v473
    %2093 = vmatprep.subr.bf16.mxu0 %v480
    %2094 = vmatpush1.bf16.msra.mxu0 %v479
    %2095 = vmatprep.subr.bf16.mxu0 %v486
    %2096 = vmatpush1.bf16.msra.mxu0 %v485
    %2097 = vmatprep.subr.bf16.mxu0 %v492
    %2098 = vmatpush1.bf16.msra.mxu0 %v491
    %2099 = vmatprep.subr.bf16.mxu0 %v498
    %2100 = vmatpush1.bf16.msra.mxu0 %v497
    %2101 = vmatprep.subr.bf16.mxu0 %v504
    %2102 = vmatpush1.bf16.msra.mxu0 %v503
    %2103 = vmatprep.subr.bf16.mxu0 %v510
    %2104 = vmatpush1.bf16.msra.mxu0 %v509
    %2105 = vmatprep.subr.bf16.mxu0 %v516
    %2106 = vmatpush1.bf16.msra.mxu0 %v515
    %2107 = vmatprep.subr.bf16.mxu0 %v522
    %2108 = vmatpush1.bf16.msra.mxu0 %v521
    %2109 = vmatprep.subr.bf16.mxu0 %v528
    %2110 = vmatpush1.bf16.msra.mxu0 %v527
    %2111 = vmatprep.subr.bf16.mxu0 %v534
    %2112 = vmatpush1.bf16.msra.mxu0 %v533
    %2113 = vmatprep.subr.bf16.mxu0 %v540
    %2114 = vmatpush1.bf16.msra.mxu0 %v539
    %2115 = vmatprep.subr.bf16.mxu0 %v546
    %2116 = vmatpush1.bf16.msra.mxu0 %v545
    %2117 = vmatprep.subr.bf16.mxu0 %v552
    %2118 = vmatpush1.bf16.msra.mxu0 %v551
    %2119 = vmatprep.subr.bf16.mxu0 %v558
    %2120 = vmatpush1.bf16.msra.mxu0 %v557
    %2121 = vmatprep.subr.bf16.mxu0 %v564
    %2122 = vmatpush1.bf16.msra.mxu0 %v563
    %2123 = vmatprep.mubr.bf16.mxu0 %v2090
    %2124 = vmatmul.mubr.bf16.gmra.mrb[0].mxu0 %v2089
    %v2125 = vpop.f32.mrb[0].mxu0
    %v2126 = vadd.f32 %v669, %v2125
    %v2127 = vpop.f32.mrb[0].mxu0
    %v2128 = vadd.f32 %v673, %v2127
    %v2129 = vpop.f32.mrb[0].mxu0
    %v2130 = vpop.f32.mrb[0].mxu0
    %2131 = vdwg.mxu0
    %2132 = vmatprep.subr.bf16.mxu0 %v476
    %2133 = vmatpush1.bf16.msra.mxu0 %v475
    %2134 = vmatprep.subr.bf16.mxu0 %v482
    %2135 = vmatpush1.bf16.msra.mxu0 %v481
    %2136 = vmatprep.subr.bf16.mxu0 %v488
    %2137 = vmatpush1.bf16.msra.mxu0 %v487
    %2138 = vmatprep.subr.bf16.mxu0 %v494
    %2139 = vmatpush1.bf16.msra.mxu0 %v493
    %2140 = vmatprep.subr.bf16.mxu0 %v500
    %2141 = vmatpush1.bf16.msra.mxu0 %v499
    %2142 = vmatprep.subr.bf16.mxu0 %v506
    %2143 = vmatpush1.bf16.msra.mxu0 %v505
    %2144 = vmatprep.subr.bf16.mxu0 %v512
    %2145 = vmatpush1.bf16.msra.mxu0 %v511
    %2146 = vmatprep.subr.bf16.mxu0 %v518
    %2147 = vmatpush1.bf16.msra.mxu0 %v517
    %2148 = vmatprep.subr.bf16.mxu0 %v524
    %2149 = vmatpush1.bf16.msra.mxu0 %v523
    %2150 = vmatprep.subr.bf16.mxu0 %v530
    %2151 = vmatpush1.bf16.msra.mxu0 %v529
    %2152 = vmatprep.subr.bf16.mxu0 %v536
    %2153 = vmatpush1.bf16.msra.mxu0 %v535
    %2154 = vmatprep.subr.bf16.mxu0 %v542
    %2155 = vmatpush1.bf16.msra.mxu0 %v541
    %2156 = vmatprep.subr.bf16.mxu0 %v548
    %2157 = vmatpush1.bf16.msra.mxu0 %v547
    %2158 = vmatprep.subr.bf16.mxu0 %v554
    %2159 = vmatpush1.bf16.msra.mxu0 %v553
    %2160 = vmatprep.subr.bf16.mxu0 %v560
    %2161 = vmatpush1.bf16.msra.mxu0 %v559
    %2162 = vmatprep.subr.bf16.mxu0 %v566
    %2163 = vmatpush1.bf16.msra.mxu0 %v565
    %2164 = vmatprep.mubr.bf16.mxu0 %v2090
    %2165 = vmatmul.mubr.bf16.gmra.mrb[0].mxu0 %v2089
    %v2166 = vpop.f32.mrb[0].mxu0
    %v2167 = vadd.f32 %v677, %v2166
    %v2168 = vpop.f32.mrb[0].mxu0
    %v2169 = vadd.f32 %v681, %v2168
    %v2170 = vpop.f32.mrb[0].mxu0
    %v2171 = vpop.f32.mrb[0].mxu0
    %2172 = vdwg.mxu0
    %2173 = vmatprep.subr.bf16.mxu0 %v478
    %2174 = vmatpush1.bf16.msra.mxu0 %v477
    %2175 = vmatprep.subr.bf16.mxu0 %v484
    %2176 = vmatpush1.bf16.msra.mxu0 %v483
    %2177 = vmatprep.subr.bf16.mxu0 %v490
    %2178 = vmatpush1.bf16.msra.mxu0 %v489
    %2179 = vmatprep.subr.bf16.mxu0 %v496
    %2180 = vmatpush1.bf16.msra.mxu0 %v495
    %2181 = vmatprep.subr.bf16.mxu0 %v502
    %2182 = vmatpush1.bf16.msra.mxu0 %v501
    %2183 = vmatprep.subr.bf16.mxu0 %v508
    %2184 = vmatpush1.bf16.msra.mxu0 %v507
    %2185 = vmatprep.subr.bf16.mxu0 %v514
    %2186 = vmatpush1.bf16.msra.mxu0 %v513
    %2187 = vmatprep.subr.bf16.mxu0 %v520
    %2188 = vmatpush1.bf16.msra.mxu0 %v519
    %2189 = vmatprep.subr.bf16.mxu0 %v526
    %2190 = vmatpush1.bf16.msra.mxu0 %v525
    %2191 = vmatprep.subr.bf16.mxu0 %v532
    %2192 = vmatpush1.bf16.msra.mxu0 %v531
    %2193 = vmatprep.subr.bf16.mxu0 %v538
    %2194 = vmatpush1.bf16.msra.mxu0 %v537
    %2195 = vmatprep.subr.bf16.mxu0 %v544
    %2196 = vmatpush1.bf16.msra.mxu0 %v543
    %2197 = vmatprep.subr.bf16.mxu0 %v550
    %2198 = vmatpush1.bf16.msra.mxu0 %v549
    %2199 = vmatprep.subr.bf16.mxu0 %v556
    %2200 = vmatpush1.bf16.msra.mxu0 %v555
    %2201 = vmatprep.subr.bf16.mxu0 %v562
    %2202 = vmatpush1.bf16.msra.mxu0 %v561
    %2203 = vmatprep.subr.bf16.mxu0 %v568
    %2204 = vmatpush1.bf16.msra.mxu0 %v567
    %2205 = vmatprep.mubr.bf16.mxu0 %v2090
    %2206 = vmatmul.mubr.bf16.gmra.mrb[0].mxu0 %v2089
    %v2207 = vpop.f32.mrb[0].mxu0
    %v2208 = vadd.f32 %v685, %v2207
    %v2209 = vpop.f32.mrb[0].mxu0
    %v2210 = vadd.f32 %v689, %v2209
    %v2211 = vpop.f32.mrb[0].mxu0
    %v2212 = vpop.f32.mrb[0].mxu0
    %2213 = vdwg.mxu0
    %v2216 = vcombine.low %v2126, %v2128
    %v2218 = vunpack.c.l.s4 1966171168
    %v2219 = vunpack.c.0.s8 %v2218
    %v2220 = vlaneseq
    %v2221 = vshrl.u32 %v2220, 7
    %v2222 = vsub.s32 %v2219, %v2221
    %v2223 = vrot.slane %v2216, %v2222
    %v2225 = vunpack.c.l.s4 1966171168
    %v2226 = vunpack.c.0.s8 %v2225
    %v2227 = vlaneseq
    %v2228 = vshrl.u32 %v2227, 7
    %v2229 = vsub.s32 %v2226, %v2228
    %v2230 = vrot.slane %v2223, %v2229
    %v2232 = vadd.f32 %v2077, %v2230
    %v2233 = vxor.u32 %v2232, 2147483648
    %v2234 = vmul.f32 %v2233, 1.442695
    %v2235 = vpow.pop %v2234
    %v2236 = vadd.f32 %v2235, 1.0
    %v2237 = vrcp.pop %v2236
    %v2238 = vmul.f32 1.0, %v2237
    %v2240 = vrot.slane %v2077, 2
    %v2244 = vcombine.low %v2167, %v2169
    %v2246 = vunpack.c.l.s4 1966171168
    %v2247 = vunpack.c.0.s8 %v2246
    %v2248 = vlaneseq
    %v2249 = vshrl.u32 %v2248, 7
    %v2250 = vsub.s32 %v2247, %v2249
    %v2251 = vrot.slane %v2244, %v2250
    %v2253 = vunpack.c.l.s4 1966171168
    %v2254 = vunpack.c.0.s8 %v2253
    %v2255 = vlaneseq
    %v2256 = vshrl.u32 %v2255, 7
    %v2257 = vsub.s32 %v2254, %v2256
    %v2258 = vrot.slane %v2251, %v2257
    %v2260 = vadd.f32 %v2240, %v2258
    %v2261 = vxor.u32 %v2260, 2147483648
    %v2262 = vmul.f32 %v2261, 1.442695
    %v2263 = vpow.pop %v2262
    %v2264 = vadd.f32 %v2263, 1.0
    %v2265 = vrcp.pop %v2264
    %v2266 = vmul.f32 1.0, %v2265
    %v2269 = vcombine.low %v2208, %v2210
    %v2271 = vunpack.c.l.s4 1966171168
    %v2272 = vunpack.c.0.s8 %v2271
    %v2273 = vlaneseq
    %v2274 = vshrl.u32 %v2273, 7
    %v2275 = vsub.s32 %v2272, %v2274
    %v2276 = vrot.slane %v2269, %v2275
    %v2278 = vunpack.c.l.s4 1966171168
    %v2279 = vunpack.c.0.s8 %v2278
    %v2280 = vlaneseq
    %v2281 = vshrl.u32 %v2280, 7
    %v2282 = vsub.s32 %v2279, %v2281
    %v2283 = vrot.slane %v2276, %v2282
    %v2285 = vmul.f32 %v2238, %v2283
    %v2286 = vrot.slane %v2077, 4
    %v2288 = vadd.f32 %v2286, %v2285
    %v2289 = vtanh.pop %v2288
    %v2290 = vsub.f32 1.0, %v2266
    %v2291 = vmul.f32 %v2290, %v2289
    %v2292 = vmul.f32 %v2266, %v2061
    %v2293 = vadd.f32 %v2291, %v2292
    %s2294 = scalar_lea.vmem [#allocation10], 6
    %2295 = vst.msk [vmem:[%s2294] ss:$8 sm:$0x3] %vm902, %v2293
    %2296 = vst.msk [vmem:[%s2294] ss:$8 sm:$0x0] %vm902, %v2293
    %s2297 = sadd.s32 %s159, 7
    %s2298 = sld [smem:[#allocation4 + %s2297]]
    %s2299 = sshra.s32 %s2298, 3
    %s2300 = sand.u32 %s2298, 7
    %s2301 = sshra.s32 %s2298, 3
    %s2302 = sand.u32 %s2298, 7
    %s2303 = smul.u32 %s2299, 6
    %s2304 = smul.u32 %s2303, 8
    %s2305 = sadd.s32 %s2304, %s2302
    %s2306 = scalar_lea.vmem [#allocation5], %s2305
    %v2307 = vld [vmem:[%s2306] ss:$8 sm:$0xf]
    %v2308 = vld [vmem:[%s2306] ss:$8 sm:$0x30]
    %v2309 = vor.u32 %v2307, %v2308
    %v2311 = vlaneseq
    %v2312 = vshrl.u32 %v2311, 7
    %v2313 = vsub.s32 0, %v2312
    %v2314 = vrot.slane %v2293, %v2313
    %v2315 = vlaneseq
    %v2316 = vshrl.u32 %v2315, 7
    %v2317 = vsub.s32 1, %v2316
    %v2318 = vrot.slane %v2293, %v2317
    %v2321 = vpack.c.bf16 %v2314, %v2314
    %v2322 = vpack.c.bf16 %v2318, %v2318
    %2323 = vmatprep.subr.bf16.mxu0 %v474
    %2324 = vmatpush1.bf16.msra.mxu0 %v473
    %2325 = vmatprep.subr.bf16.mxu0 %v480
    %2326 = vmatpush1.bf16.msra.mxu0 %v479
    %2327 = vmatprep.subr.bf16.mxu0 %v486
    %2328 = vmatpush1.bf16.msra.mxu0 %v485
    %2329 = vmatprep.subr.bf16.mxu0 %v492
    %2330 = vmatpush1.bf16.msra.mxu0 %v491
    %2331 = vmatprep.subr.bf16.mxu0 %v498
    %2332 = vmatpush1.bf16.msra.mxu0 %v497
    %2333 = vmatprep.subr.bf16.mxu0 %v504
    %2334 = vmatpush1.bf16.msra.mxu0 %v503
    %2335 = vmatprep.subr.bf16.mxu0 %v510
    %2336 = vmatpush1.bf16.msra.mxu0 %v509
    %2337 = vmatprep.subr.bf16.mxu0 %v516
    %2338 = vmatpush1.bf16.msra.mxu0 %v515
    %2339 = vmatprep.subr.bf16.mxu0 %v522
    %2340 = vmatpush1.bf16.msra.mxu0 %v521
    %2341 = vmatprep.subr.bf16.mxu0 %v528
    %2342 = vmatpush1.bf16.msra.mxu0 %v527
    %2343 = vmatprep.subr.bf16.mxu0 %v534
    %2344 = vmatpush1.bf16.msra.mxu0 %v533
    %2345 = vmatprep.subr.bf16.mxu0 %v540
    %2346 = vmatpush1.bf16.msra.mxu0 %v539
    %2347 = vmatprep.subr.bf16.mxu0 %v546
    %2348 = vmatpush1.bf16.msra.mxu0 %v545
    %2349 = vmatprep.subr.bf16.mxu0 %v552
    %2350 = vmatpush1.bf16.msra.mxu0 %v551
    %2351 = vmatprep.subr.bf16.mxu0 %v558
    %2352 = vmatpush1.bf16.msra.mxu0 %v557
    %2353 = vmatprep.subr.bf16.mxu0 %v564
    %2354 = vmatpush1.bf16.msra.mxu0 %v563
    %2355 = vmatprep.mubr.bf16.mxu0 %v2322
    %2356 = vmatmul.mubr.bf16.gmra.mrb[0].mxu0 %v2321
    %v2357 = vpop.f32.mrb[0].mxu0
    %v2358 = vadd.f32 %v669, %v2357
    %v2359 = vpop.f32.mrb[0].mxu0
    %v2360 = vadd.f32 %v673, %v2359
    %v2361 = vpop.f32.mrb[0].mxu0
    %v2362 = vpop.f32.mrb[0].mxu0
    %2363 = vdwg.mxu0
    %2364 = vmatprep.subr.bf16.mxu0 %v476
    %2365 = vmatpush1.bf16.msra.mxu0 %v475
    %2366 = vmatprep.subr.bf16.mxu0 %v482
    %2367 = vmatpush1.bf16.msra.mxu0 %v481
    %2368 = vmatprep.subr.bf16.mxu0 %v488
    %2369 = vmatpush1.bf16.msra.mxu0 %v487
    %2370 = vmatprep.subr.bf16.mxu0 %v494
    %2371 = vmatpush1.bf16.msra.mxu0 %v493
    %2372 = vmatprep.subr.bf16.mxu0 %v500
    %2373 = vmatpush1.bf16.msra.mxu0 %v499
    %2374 = vmatprep.subr.bf16.mxu0 %v506
    %2375 = vmatpush1.bf16.msra.mxu0 %v505
    %2376 = vmatprep.subr.bf16.mxu0 %v512
    %2377 = vmatpush1.bf16.msra.mxu0 %v511
    %2378 = vmatprep.subr.bf16.mxu0 %v518
    %2379 = vmatpush1.bf16.msra.mxu0 %v517
    %2380 = vmatprep.subr.bf16.mxu0 %v524
    %2381 = vmatpush1.bf16.msra.mxu0 %v523
    %2382 = vmatprep.subr.bf16.mxu0 %v530
    %2383 = vmatpush1.bf16.msra.mxu0 %v529
    %2384 = vmatprep.subr.bf16.mxu0 %v536
    %2385 = vmatpush1.bf16.msra.mxu0 %v535
    %2386 = vmatprep.subr.bf16.mxu0 %v542
    %2387 = vmatpush1.bf16.msra.mxu0 %v541
    %2388 = vmatprep.subr.bf16.mxu0 %v548
    %2389 = vmatpush1.bf16.msra.mxu0 %v547
    %2390 = vmatprep.subr.bf16.mxu0 %v554
    %2391 = vmatpush1.bf16.msra.mxu0 %v553
    %2392 = vmatprep.subr.bf16.mxu0 %v560
    %2393 = vmatpush1.bf16.msra.mxu0 %v559
    %2394 = vmatprep.subr.bf16.mxu0 %v566
    %2395 = vmatpush1.bf16.msra.mxu0 %v565
    %2396 = vmatprep.mubr.bf16.mxu0 %v2322
    %2397 = vmatmul.mubr.bf16.gmra.mrb[0].mxu0 %v2321
    %v2398 = vpop.f32.mrb[0].mxu0
    %v2399 = vadd.f32 %v677, %v2398
    %v2400 = vpop.f32.mrb[0].mxu0
    %v2401 = vadd.f32 %v681, %v2400
    %v2402 = vpop.f32.mrb[0].mxu0
    %v2403 = vpop.f32.mrb[0].mxu0
    %2404 = vdwg.mxu0
    %2405 = vmatprep.subr.bf16.mxu0 %v478
    %2406 = vmatpush1.bf16.msra.mxu0 %v477
    %2407 = vmatprep.subr.bf16.mxu0 %v484
    %2408 = vmatpush1.bf16.msra.mxu0 %v483
    %2409 = vmatprep.subr.bf16.mxu0 %v490
    %2410 = vmatpush1.bf16.msra.mxu0 %v489
    %2411 = vmatprep.subr.bf16.mxu0 %v496
    %2412 = vmatpush1.bf16.msra.mxu0 %v495
    %2413 = vmatprep.subr.bf16.mxu0 %v502
    %2414 = vmatpush1.bf16.msra.mxu0 %v501
    %2415 = vmatprep.subr.bf16.mxu0 %v508
    %2416 = vmatpush1.bf16.msra.mxu0 %v507
    %2417 = vmatprep.subr.bf16.mxu0 %v514
    %2418 = vmatpush1.bf16.msra.mxu0 %v513
    %2419 = vmatprep.subr.bf16.mxu0 %v520
    %2420 = vmatpush1.bf16.msra.mxu0 %v519
    %2421 = vmatprep.subr.bf16.mxu0 %v526
    %2422 = vmatpush1.bf16.msra.mxu0 %v525
    %2423 = vmatprep.subr.bf16.mxu0 %v532
    %2424 = vmatpush1.bf16.msra.mxu0 %v531
    %2425 = vmatprep.subr.bf16.mxu0 %v538
    %2426 = vmatpush1.bf16.msra.mxu0 %v537
    %2427 = vmatprep.subr.bf16.mxu0 %v544
    %2428 = vmatpush1.bf16.msra.mxu0 %v543
    %2429 = vmatprep.subr.bf16.mxu0 %v550
    %2430 = vmatpush1.bf16.msra.mxu0 %v549
    %2431 = vmatprep.subr.bf16.mxu0 %v556
    %2432 = vmatpush1.bf16.msra.mxu0 %v555
    %2433 = vmatprep.subr.bf16.mxu0 %v562
    %2434 = vmatpush1.bf16.msra.mxu0 %v561
    %2435 = vmatprep.subr.bf16.mxu0 %v568
    %2436 = vmatpush1.bf16.msra.mxu0 %v567
    %2437 = vmatprep.mubr.bf16.mxu0 %v2322
    %2438 = vmatmul.mubr.bf16.gmra.mrb[0].mxu0 %v2321
    %v2439 = vpop.f32.mrb[0].mxu0
    %v2440 = vadd.f32 %v685, %v2439
    %v2441 = vpop.f32.mrb[0].mxu0
    %v2442 = vadd.f32 %v689, %v2441
    %v2443 = vpop.f32.mrb[0].mxu0
    %v2444 = vpop.f32.mrb[0].mxu0
    %2445 = vdwg.mxu0
    %v2448 = vcombine.low %v2358, %v2360
    %v2450 = vunpack.c.l.s4 1966171168
    %v2451 = vunpack.c.0.s8 %v2450
    %v2452 = vlaneseq
    %v2453 = vshrl.u32 %v2452, 7
    %v2454 = vsub.s32 %v2451, %v2453
    %v2455 = vrot.slane %v2448, %v2454
    %v2457 = vunpack.c.l.s4 1966171168
    %v2458 = vunpack.c.0.s8 %v2457
    %v2459 = vlaneseq
    %v2460 = vshrl.u32 %v2459, 7
    %v2461 = vsub.s32 %v2458, %v2460
    %v2462 = vrot.slane %v2455, %v2461
    %v2464 = vadd.f32 %v2309, %v2462
    %v2465 = vxor.u32 %v2464, 2147483648
    %v2466 = vmul.f32 %v2465, 1.442695
    %v2467 = vpow.pop %v2466
    %v2468 = vadd.f32 %v2467, 1.0
    %v2469 = vrcp.pop %v2468
    %v2470 = vmul.f32 1.0, %v2469
    %v2472 = vrot.slane %v2309, 2
    %v2476 = vcombine.low %v2399, %v2401
    %v2478 = vunpack.c.l.s4 1966171168
    %v2479 = vunpack.c.0.s8 %v2478
    %v2480 = vlaneseq
    %v2481 = vshrl.u32 %v2480, 7
    %v2482 = vsub.s32 %v2479, %v2481
    %v2483 = vrot.slane %v2476, %v2482
    %v2485 = vunpack.c.l.s4 1966171168
    %v2486 = vunpack.c.0.s8 %v2485
    %v2487 = vlaneseq
    %v2488 = vshrl.u32 %v2487, 7
    %v2489 = vsub.s32 %v2486, %v2488
    %v2490 = vrot.slane %v2483, %v2489
    %v2492 = vadd.f32 %v2472, %v2490
    %v2493 = vxor.u32 %v2492, 2147483648
    %v2494 = vmul.f32 %v2493, 1.442695
    %v2495 = vpow.pop %v2494
    %v2496 = vadd.f32 %v2495, 1.0
    %v2497 = vrcp.pop %v2496
    %v2498 = vmul.f32 1.0, %v2497
    %v2501 = vcombine.low %v2440, %v2442
    %v2503 = vunpack.c.l.s4 1966171168
    %v2504 = vunpack.c.0.s8 %v2503
    %v2505 = vlaneseq
    %v2506 = vshrl.u32 %v2505, 7
    %v2507 = vsub.s32 %v2504, %v2506
    %v2508 = vrot.slane %v2501, %v2507
    %v2510 = vunpack.c.l.s4 1966171168
    %v2511 = vunpack.c.0.s8 %v2510
    %v2512 = vlaneseq
    %v2513 = vshrl.u32 %v2512, 7
    %v2514 = vsub.s32 %v2511, %v2513
    %v2515 = vrot.slane %v2508, %v2514
    %v2517 = vmul.f32 %v2470, %v2515
    %v2518 = vrot.slane %v2309, 4
    %v2520 = vadd.f32 %v2518, %v2517
    %v2521 = vtanh.pop %v2520
    %v2522 = vsub.f32 1.0, %v2498
    %v2523 = vmul.f32 %v2522, %v2521
    %v2524 = vmul.f32 %v2498, %v2293
    %v2525 = vadd.f32 %v2523, %v2524
    %s2526 = scalar_lea.vmem [#allocation10], 7
    %2527 = vst.msk [vmem:[%s2526] ss:$8 sm:$0x3] %vm902, %v2525
    %2528 = vst.msk [vmem:[%s2526] ss:$8 sm:$0x0] %vm902, %v2525
    %2529 = vst.msk [vmem:[#allocation2] sm:$0x3] %vm902, %v2525
    // Predicated region
    $region30: #{tpu_custom_call.1} parent=1 // pred_check
      _
    $region31: #{tpu_custom_call.1} parent=1 // pred_check_branch
      %2531 = sbr.rel (0) target = $region33
    $region32: #{tpu_custom_call.1} parent=1 // pred_region
      %s2533 = ssub.s32 256, 256
      %2534 = vsyncadd [#allocation7], %s2533
      %s2536 = sshll.u32 [#allocation10], 4
      %s2537 = int_to_ptr.vmem [resolvable:$true] %s2536
      %2539 = dma.vmem_to_hbm [thread:$0]  %s2537, 256, %s5, [#allocation7]
    $region33: #{tpu_custom_call.1} parent=1 // pred_fallthru
      _
    // Predicated region
    $region34: #{tpu_custom_call.1} parent=1 // pred_check
      _
    $region35: #{tpu_custom_call.1} parent=1 // pred_check_branch
      %2541 = sbr.rel (0) target = $region37
    $region36: #{tpu_custom_call.1} parent=1 // pred_region
      %2542 = dma.done [#allocation7], 256
    $region37: #{tpu_custom_call.1} parent=1 // pred_fallthru
      _
    %2543 = vsyncpa [#allocation6], 1
    %2544 = vsyncpa [#allocation9], 1
    %2545 = vsyncpa [#allocation7], 1

</llo_original>
